<compile_context>
chip_gen: v7x
topology: tpu7x:2x2x1
jax: 0.10.0
libtpu: 0.0.40
codegen_flags: <defaults>
</compile_context>

<pallas_src>
import functools

import jax
import jax.numpy as jnp
from jax.experimental import pallas as pl
from jax.experimental.pallas import tpu as pltpu

EPS = 1e-5


def _layernorm(x, scale, shift):
    # matches the book's LayerNorm: unbiased=False variance, eps=1e-5
    mean = jnp.mean(x, axis=-1, keepdims=True)
    var = jnp.mean((x - mean) ** 2, axis=-1, keepdims=True)
    return scale * (x - mean) * jax.lax.rsqrt(var + EPS) + shift


def _gelu(x):
    # GELU tanh approximation (as in the GPT2-like LLM reference implementation)
    return 0.5 * x * (1.0 + jnp.tanh(
        jnp.sqrt(2.0 / jnp.pi) * (x + 0.044715 * x ** 3)))


def transformer_block_kernel(x_ref,
                             ln1_g_ref, ln1_b_ref,
                             wq_ref, wk_ref, wv_ref,      # (H, E, Dh) bf16
                             wo_ref, bo_ref,              # (H, Dh, E) bf16, (1, E) f32
                             ln2_g_ref, ln2_b_ref,
                             w1_ref, b1_ref,              # (nC, E, ch) bf16, (nC, 1, ch) f32
                             w2_ref, b2_ref,              # (nC, ch, E) bf16, (1, E) f32
                             o_ref, *, num_heads, head_dim, ff_chunks):
    bf16 = jnp.bfloat16
    x = x_ref[0].astype(jnp.float32)                      # (S, E)
    S, E = x.shape
    scale = 1.0 / jnp.sqrt(jnp.float32(head_dim))

    # ---------------- attention branch ----------------
    h = _layernorm(x, ln1_g_ref[...], ln1_b_ref[...])     # f32 (S, E)
    h_b = h.astype(bf16)                                  # cast once for all QKV dots

    row = jax.lax.broadcasted_iota(jnp.int32, (S, S), 0)
    col = jax.lax.broadcasted_iota(jnp.int32, (S, S), 1)
    causal = row >= col

    attn = jnp.zeros((S, E), jnp.float32)                 # Wo folded into the head loop
    for hd in range(num_heads):                           # static unroll over heads
        qh = jnp.dot(h_b, wq_ref[hd], preferred_element_type=jnp.float32) * scale
        kh = jnp.dot(h_b, wk_ref[hd], preferred_element_type=jnp.float32)
        vh = jnp.dot(h_b, wv_ref[hd], preferred_element_type=jnp.float32)
        # q @ k^T without an explicit transpose (contract on the Dh axis of both)
        s = jax.lax.dot_general(qh.astype(bf16), kh.astype(bf16),
                                (((1,), (1,)), ((), ())),
                                preferred_element_type=jnp.float32)
        s = jnp.where(causal, s, -jnp.inf)
        s = s - jnp.max(s, axis=-1, keepdims=True)
        p = jnp.exp(s)
        p = p * pl.reciprocal(jnp.sum(p, axis=-1, keepdims=True), approx=True)
        ctx = jnp.dot(p.astype(bf16), vh.astype(bf16),
                      preferred_element_type=jnp.float32)
        attn = attn + jnp.dot(ctx.astype(bf16), wo_ref[hd],
                              preferred_element_type=jnp.float32)
    x = x + attn + bo_ref[...]

    # ---------------- feed-forward branch (chunked over the 4E hidden dim) ----------------
    h2 = _layernorm(x, ln2_g_ref[...], ln2_b_ref[...])
    h2_b = h2.astype(bf16)
    ff = jnp.zeros((S, E), jnp.float32)
    for c in range(ff_chunks):
        f = jnp.dot(h2_b, w1_ref[c], preferred_element_type=jnp.float32) + b1_ref[c]
        f = _gelu(f)
        ff = ff + jnp.dot(f.astype(bf16), w2_ref[c],
                          preferred_element_type=jnp.float32)
    x = x + ff + b2_ref[...]

    o_ref[0] = x.astype(o_ref.dtype)


def _vmem_limit_bytes():
    # Raise the scoped-VMEM limit above v5e's 16 MiB default, but stay well under
    # physical capacity (64 MiB on v7x, 128 MiB on v5e/v6e).
    try:
        cap = pltpu.get_tpu_info().vmem_capacity_bytes
        return int(min(cap // 2, 64 * 1024 * 1024))
    except Exception:
        return None


def transformer_block(x, params, num_heads, ff_chunk=512):
    (ln1_g, ln1_b, wq, wk, wv, wo, bo,
     ln2_g, ln2_b, w1, b1, w2, b2) = params
    B, S, E = x.shape
    H4 = w1.shape[1]
    Dh = E // num_heads
    assert num_heads * Dh == E
    ch = min(ff_chunk, H4)
    assert H4 % ch == 0
    nC = H4 // ch

    bf16, f32 = jnp.bfloat16, jnp.float32
    # Head-major / chunk-major weight layouts (done once, wrapper side), bf16 for the MXU.
    wq_h = wq.reshape(E, num_heads, Dh).transpose(1, 0, 2).astype(bf16)   # (H, E, Dh)
    wk_h = wk.reshape(E, num_heads, Dh).transpose(1, 0, 2).astype(bf16)
    wv_h = wv.reshape(E, num_heads, Dh).transpose(1, 0, 2).astype(bf16)
    wo_h = wo.reshape(num_heads, Dh, E).astype(bf16)                      # (H, Dh, E)
    w1_c = w1.reshape(E, nC, ch).transpose(1, 0, 2).astype(bf16)          # (nC, E, ch)
    b1_c = b1.reshape(nC, 1, ch).astype(f32)
    w2_c = w2.reshape(nC, ch, E).astype(bf16)                             # (nC, ch, E)

    kernel = functools.partial(transformer_block_kernel, num_heads=num_heads,
                               head_dim=Dh, ff_chunks=nC)

    def full(shape):
        # Constant-index weight blocks: resident in VMEM across the whole grid
        # (block == full array, so the (8,128) divisibility rule does not apply).
        return pl.BlockSpec(shape, lambda b: (0,) * len(shape))

    in_specs = [
        pl.BlockSpec((1, S, E), lambda b: (b, 0, 0)),      # x
        full((1, E)), full((1, E)),                        # ln1 scale / shift
        full((num_heads, E, Dh)),                          # Wq (head-major, bf16)
        full((num_heads, E, Dh)),                          # Wk
        full((num_heads, E, Dh)),                          # Wv
        full((num_heads, Dh, E)), full((1, E)),            # Wo, bo
        full((1, E)), full((1, E)),                        # ln2 scale / shift
        full((nC, E, ch)), full((nC, 1, ch)),              # W1, b1 (hidden-chunked)
        full((nC, ch, E)), full((1, E)),                   # W2, b2
    ]
    return pl.pallas_call(
        kernel,
        out_shape=jax.ShapeDtypeStruct((B, S, E), x.dtype),
        grid=(B,),
        in_specs=in_specs,
        out_specs=pl.BlockSpec((1, S, E), lambda b: (b, 0, 0)),
        compiler_params=pltpu.CompilerParams(
            dimension_semantics=("parallel",),
            vmem_limit_bytes=_vmem_limit_bytes()),
    )(x, ln1_g.astype(f32), ln1_b.astype(f32),
      wq_h, wk_h, wv_h, wo_h, bo.astype(f32),
      ln2_g.astype(f32), ln2_b.astype(f32),
      w1_c, b1_c, w2_c, b2.astype(f32))


def _reference(x, params, num_heads):
    (ln1_g, ln1_b, wq, wk, wv, wo, bo, ln2_g, ln2_b, w1, b1, w2, b2) = params
    B, S, E = x.shape
    Dh = E // num_heads
    h = _layernorm(x, ln1_g, ln1_b)
    q = h @ wq
    k = h @ wk
    v = h @ wv
    q = q.reshape(B, S, num_heads, Dh).transpose(0, 2, 1, 3)
    k = k.reshape(B, S, num_heads, Dh).transpose(0, 2, 1, 3)
    v = v.reshape(B, S, num_heads, Dh).transpose(0, 2, 1, 3)
    scores = jnp.einsum('bhqd,bhkd->bhqk', q, k) / jnp.sqrt(jnp.float32(Dh))
    mask = jnp.tril(jnp.ones((S, S), dtype=bool))
    scores = jnp.where(mask, scores, -jnp.inf)
    p = jax.nn.softmax(scores, axis=-1)
    ctx = jnp.einsum('bhqk,bhkd->bhqd', p, v).transpose(0, 2, 1, 3).reshape(B, S, E)
    x = x + (ctx @ wo + bo)
    h2 = _layernorm(x, ln2_g, ln2_b)
    f = _gelu(h2 @ w1 + b1) @ w2 + b2
    return x + f


if __name__ == "__main__":
    cfg = dict(emb_dim=32, context_length=8, n_heads=4, drop_rate=0.0, qkv_bias=False)
    B, S, E = 2, cfg['context_length'], cfg['emb_dim']
    H4 = 4 * E

    key = jax.random.PRNGKey(0)
    keys = jax.random.split(key, 8)
    scale = 0.02
    params = (
        jnp.ones((1, E), jnp.float32),                                   # ln1 scale
        jnp.zeros((1, E), jnp.float32),                                  # ln1 shift
        scale * jax.random.normal(keys[0], (E, E), jnp.float32),         # Wq
        scale * jax.random.normal(keys[1], (E, E), jnp.float32),         # Wk
        scale * jax.random.normal(keys[2], (E, E), jnp.float32),         # Wv
        scale * jax.random.normal(keys[3], (E, E), jnp.float32),         # Wo
        jnp.zeros((1, E), jnp.float32),                                  # bo
        jnp.ones((1, E), jnp.float32),                                   # ln2 scale
        jnp.zeros((1, E), jnp.float32),                                  # ln2 shift
        scale * jax.random.normal(keys[4], (E, H4), jnp.float32),        # W1
        jnp.zeros((1, H4), jnp.float32),                                 # b1
        scale * jax.random.normal(keys[5], (H4, E), jnp.float32),        # W2
        jnp.zeros((1, E), jnp.float32),                                  # b2
    )
    x = jax.random.normal(keys[6], (B, S, E), jnp.float32)

    out = transformer_block(x, params, num_heads=cfg['n_heads'])
    out = jax.block_until_ready(out)

    ref = _reference(x, params, cfg['n_heads'])
    assert out.shape == (B, S, E)
    # bf16 MXU operands + approx reciprocal -> compare against f32 reference at ~1e-2.
    assert jnp.allclose(out, ref, atol=2e-2, rtol=2e-2), "mismatch vs reference"
    print("KERNEL_OK")
</pallas_src>

<mosaic_0001>
module attributes {stable_mosaic.version = 11 : i64} {
  func.func @transformer_block_kernel(%arg0: i32, %arg1: memref<1x8x32xf32, #tpu.memory_space<vmem>>, %arg2: memref<1x32xf32, #tpu.memory_space<vmem>>, %arg3: memref<1x32xf32, #tpu.memory_space<vmem>>, %arg4: memref<4x32x8xbf16, #tpu.memory_space<vmem>>, %arg5: memref<4x32x8xbf16, #tpu.memory_space<vmem>>, %arg6: memref<4x32x8xbf16, #tpu.memory_space<vmem>>, %arg7: memref<4x8x32xbf16, #tpu.memory_space<vmem>>, %arg8: memref<1x32xf32, #tpu.memory_space<vmem>>, %arg9: memref<1x32xf32, #tpu.memory_space<vmem>>, %arg10: memref<1x32xf32, #tpu.memory_space<vmem>>, %arg11: memref<1x32x128xbf16, #tpu.memory_space<vmem>>, %arg12: memref<1x1x128xf32, #tpu.memory_space<vmem>>, %arg13: memref<1x128x32xbf16, #tpu.memory_space<vmem>>, %arg14: memref<1x32xf32, #tpu.memory_space<vmem>>, %arg15: memref<1x8x32xf32, #tpu.memory_space<vmem>>) attributes {dimension_semantics = [#tpu.dimension_semantics<parallel>], iteration_bounds = array<i64: 2>, scalar_prefetch = 0 : i64, scratch_operands = 0 : i64, tpu.core_type = #tpu.core_type<tc>, window_params = [{transform_indices = @transform_0, window_bounds = array<i64: 1, 8, 32>}, {pipeline_mode = #tpu.pipeline_mode<synchronous>, transform_indices = @transform_1, window_bounds = array<i64: 1, 32>}, {pipeline_mode = #tpu.pipeline_mode<synchronous>, transform_indices = @transform_2, window_bounds = array<i64: 1, 32>}, {pipeline_mode = #tpu.pipeline_mode<synchronous>, transform_indices = @transform_3, window_bounds = array<i64: 4, 32, 8>}, {pipeline_mode = #tpu.pipeline_mode<synchronous>, transform_indices = @transform_4, window_bounds = array<i64: 4, 32, 8>}, {pipeline_mode = #tpu.pipeline_mode<synchronous>, transform_indices = @transform_5, window_bounds = array<i64: 4, 32, 8>}, {pipeline_mode = #tpu.pipeline_mode<synchronous>, transform_indices = @transform_6, window_bounds = array<i64: 4, 8, 32>}, {pipeline_mode = #tpu.pipeline_mode<synchronous>, transform_indices = @transform_7, window_bounds = array<i64: 1, 32>}, {pipeline_mode = #tpu.pipeline_mode<synchronous>, transform_indices = @transform_8, window_bounds = array<i64: 1, 32>}, {pipeline_mode = #tpu.pipeline_mode<synchronous>, transform_indices = @transform_9, window_bounds = array<i64: 1, 32>}, {pipeline_mode = #tpu.pipeline_mode<synchronous>, transform_indices = @transform_10, window_bounds = array<i64: 1, 32, 128>}, {pipeline_mode = #tpu.pipeline_mode<synchronous>, transform_indices = @transform_11, window_bounds = array<i64: 1, 1, 128>}, {pipeline_mode = #tpu.pipeline_mode<synchronous>, transform_indices = @transform_12, window_bounds = array<i64: 1, 128, 32>}, {pipeline_mode = #tpu.pipeline_mode<synchronous>, transform_indices = @transform_13, window_bounds = array<i64: 1, 32>}, {transform_indices = @transform_14, window_bounds = array<i64: 1, 8, 32>}]} {
    %c0 = arith.constant 0 : index
    %c0_0 = arith.constant 0 : index
    %c0_1 = arith.constant 0 : index
    %0 = vector.load %arg1[%c0, %c0_0, %c0_1] : memref<1x8x32xf32, #tpu.memory_space<vmem>>, vector<1x8x32xf32>
    %1 = vector.shape_cast %0 : vector<1x8x32xf32> to vector<8x32xf32>
    %cst = arith.constant 8.000000e+00 : f32
    %2 = math.sqrt %cst : f32
    %cst_2 = arith.constant 1.000000e+00 : f32
    %3 = arith.divf %cst_2, %2 : f32
    %c0_3 = arith.constant 0 : index
    %c0_4 = arith.constant 0 : index
    %4 = vector.load %arg2[%c0_3, %c0_4] : memref<1x32xf32, #tpu.memory_space<vmem>>, vector<1x32xf32>
    %c0_5 = arith.constant 0 : index
    %c0_6 = arith.constant 0 : index
    %5 = vector.load %arg3[%c0_5, %c0_6] : memref<1x32xf32, #tpu.memory_space<vmem>>, vector<1x32xf32>
    %cst_7 = arith.constant dense<0.000000e+00> : vector<8xf32>
    %6 = vector.multi_reduction <add>, %1, %cst_7 [1] : vector<8x32xf32> to vector<8xf32>
    %7 = vector.shape_cast %6 : vector<8xf32> to vector<8x1xf32>
    %cst_8 = arith.constant 3.200000e+01 : f32
    %8 = vector.broadcast %cst_8 : f32 to vector<8x1xf32>
    %9 = arith.divf %7, %8 : vector<8x1xf32>
    %10 = vector.broadcast %9 : vector<8x1xf32> to vector<8x32xf32>
    %11 = arith.subf %1, %10 : vector<8x32xf32>
    %12 = arith.mulf %11, %11 : vector<8x32xf32>
    %cst_9 = arith.constant dense<0.000000e+00> : vector<8xf32>
    %13 = vector.multi_reduction <add>, %12, %cst_9 [1] : vector<8x32xf32> to vector<8xf32>
    %14 = vector.shape_cast %13 : vector<8xf32> to vector<8x1xf32>
    %cst_10 = arith.constant 3.200000e+01 : f32
    %15 = vector.broadcast %cst_10 : f32 to vector<8x1xf32>
    %16 = arith.divf %14, %15 : vector<8x1xf32>
    %17 = vector.broadcast %9 : vector<8x1xf32> to vector<8x32xf32>
    %18 = arith.subf %1, %17 : vector<8x32xf32>
    %19 = vector.broadcast %4 : vector<1x32xf32> to vector<8x32xf32>
    %20 = arith.mulf %19, %18 : vector<8x32xf32>
    %cst_11 = arith.constant 9.99999974E-6 : f32
    %21 = vector.broadcast %cst_11 : f32 to vector<8x1xf32>
    %22 = arith.addf %16, %21 : vector<8x1xf32>
    %23 = math.rsqrt %22 : vector<8x1xf32>
    %24 = vector.broadcast %23 : vector<8x1xf32> to vector<8x32xf32>
    %25 = arith.mulf %20, %24 : vector<8x32xf32>
    %26 = vector.broadcast %5 : vector<1x32xf32> to vector<8x32xf32>
    %27 = arith.addf %25, %26 : vector<8x32xf32>
    %28 = arith.truncf %27 : vector<8x32xf32> to vector<8x32xbf16>
    %29 = tpu.iota {dimensions = array<i32: 0>} : vector<8x8xi32>
    %30 = tpu.iota {dimensions = array<i32: 1>} : vector<8x8xi32>
    %31 = arith.cmpi sge, %29, %30 : vector<8x8xi32>
    %cst_12 = arith.constant 0.000000e+00 : f32
    %32 = vector.broadcast %cst_12 : f32 to vector<8x32xf32>
    %c0_13 = arith.constant 0 : index
    %c0_14 = arith.constant 0 : index
    %c0_15 = arith.constant 0 : index
    %33 = vector.load %arg4[%c0_13, %c0_14, %c0_15] : memref<4x32x8xbf16, #tpu.memory_space<vmem>>, vector<1x32x8xbf16>
    %34 = vector.shape_cast %33 : vector<1x32x8xbf16> to vector<32x8xbf16>
    %cst_16 = arith.constant dense<0.000000e+00> : vector<8x8xf32>
    %35 = tpu.matmul %28, %34, %cst_16 {dimension_numbers = #tpu.dot_dimension_numbers<[1], [0], [0], [1], [0, 0, 1, 1], [], []>} : vector<8x32xbf16>, vector<32x8xbf16>, vector<8x8xf32> -> vector<8x8xf32>
    %36 = vector.broadcast %3 : f32 to vector<8x8xf32>
    %37 = arith.mulf %35, %36 : vector<8x8xf32>
    %c0_17 = arith.constant 0 : index
    %c0_18 = arith.constant 0 : index
    %c0_19 = arith.constant 0 : index
    %38 = vector.load %arg5[%c0_17, %c0_18, %c0_19] : memref<4x32x8xbf16, #tpu.memory_space<vmem>>, vector<1x32x8xbf16>
    %39 = vector.shape_cast %38 : vector<1x32x8xbf16> to vector<32x8xbf16>
    %cst_20 = arith.constant dense<0.000000e+00> : vector<8x8xf32>
    %40 = tpu.matmul %28, %39, %cst_20 {dimension_numbers = #tpu.dot_dimension_numbers<[1], [0], [0], [1], [0, 0, 1, 1], [], []>} : vector<8x32xbf16>, vector<32x8xbf16>, vector<8x8xf32> -> vector<8x8xf32>
    %c0_21 = arith.constant 0 : index
    %c0_22 = arith.constant 0 : index
    %c0_23 = arith.constant 0 : index
    %41 = vector.load %arg6[%c0_21, %c0_22, %c0_23] : memref<4x32x8xbf16, #tpu.memory_space<vmem>>, vector<1x32x8xbf16>
    %42 = vector.shape_cast %41 : vector<1x32x8xbf16> to vector<32x8xbf16>
    %cst_24 = arith.constant dense<0.000000e+00> : vector<8x8xf32>
    %43 = tpu.matmul %28, %42, %cst_24 {dimension_numbers = #tpu.dot_dimension_numbers<[1], [0], [0], [1], [0, 0, 1, 1], [], []>} : vector<8x32xbf16>, vector<32x8xbf16>, vector<8x8xf32> -> vector<8x8xf32>
    %44 = arith.truncf %37 : vector<8x8xf32> to vector<8x8xbf16>
    %45 = arith.truncf %40 : vector<8x8xf32> to vector<8x8xbf16>
    %cst_25 = arith.constant dense<0.000000e+00> : vector<8x8xf32>
    %46 = tpu.matmul %44, %45, %cst_25 {dimension_numbers = #tpu.dot_dimension_numbers<[1], [1], [0], [0], [0, 0, 1, 0], [], []>} : vector<8x8xbf16>, vector<8x8xbf16>, vector<8x8xf32> -> vector<8x8xf32>
    %cst_26 = arith.constant 0xFF800000 : f32
    %47 = vector.broadcast %cst_26 : f32 to vector<8x8xf32>
    %48 = arith.select %31, %46, %47 : vector<8x8xi1>, vector<8x8xf32>
    %cst_27 = arith.constant dense<0xFF800000> : vector<8xf32>
    %49 = vector.multi_reduction <maximumf>, %48, %cst_27 [1] : vector<8x8xf32> to vector<8xf32>
    %50 = vector.shape_cast %49 : vector<8xf32> to vector<8x1xf32>
    %51 = vector.broadcast %50 : vector<8x1xf32> to vector<8x8xf32>
    %52 = arith.subf %48, %51 : vector<8x8xf32>
    %53 = math.exp %52 : vector<8x8xf32>
    %cst_28 = arith.constant dense<0.000000e+00> : vector<8xf32>
    %54 = vector.multi_reduction <add>, %53, %cst_28 [1] : vector<8x8xf32> to vector<8xf32>
    %55 = vector.shape_cast %54 : vector<8xf32> to vector<8x1xf32>
    %56 = tpu.reciprocal %55 {approx = true} : vector<8x1xf32> -> vector<8x1xf32>
    %57 = vector.broadcast %56 : vector<8x1xf32> to vector<8x8xf32>
    %58 = arith.mulf %53, %57 : vector<8x8xf32>
    %59 = arith.truncf %58 : vector<8x8xf32> to vector<8x8xbf16>
    %60 = arith.truncf %43 : vector<8x8xf32> to vector<8x8xbf16>
    %cst_29 = arith.constant dense<0.000000e+00> : vector<8x8xf32>
    %61 = tpu.matmul %59, %60, %cst_29 {dimension_numbers = #tpu.dot_dimension_numbers<[1], [0], [0], [1], [0, 0, 1, 1], [], []>} : vector<8x8xbf16>, vector<8x8xbf16>, vector<8x8xf32> -> vector<8x8xf32>
    %62 = arith.truncf %61 : vector<8x8xf32> to vector<8x8xbf16>
    %c0_30 = arith.constant 0 : index
    %c0_31 = arith.constant 0 : index
    %c0_32 = arith.constant 0 : index
    %63 = vector.load %arg7[%c0_30, %c0_31, %c0_32] : memref<4x8x32xbf16, #tpu.memory_space<vmem>>, vector<1x8x32xbf16>
    %64 = vector.shape_cast %63 : vector<1x8x32xbf16> to vector<8x32xbf16>
    %cst_33 = arith.constant dense<0.000000e+00> : vector<8x32xf32>
    %65 = tpu.matmul %62, %64, %cst_33 {dimension_numbers = #tpu.dot_dimension_numbers<[1], [0], [0], [1], [0, 0, 1, 1], [], []>} : vector<8x8xbf16>, vector<8x32xbf16>, vector<8x32xf32> -> vector<8x32xf32>
    %66 = arith.addf %32, %65 : vector<8x32xf32>
    %c1 = arith.constant 1 : index
    %c0_34 = arith.constant 0 : index
    %c0_35 = arith.constant 0 : index
    %67 = vector.load %arg4[%c1, %c0_34, %c0_35] : memref<4x32x8xbf16, #tpu.memory_space<vmem>>, vector<1x32x8xbf16>
    %68 = vector.shape_cast %67 : vector<1x32x8xbf16> to vector<32x8xbf16>
    %cst_36 = arith.constant dense<0.000000e+00> : vector<8x8xf32>
    %69 = tpu.matmul %28, %68, %cst_36 {dimension_numbers = #tpu.dot_dimension_numbers<[1], [0], [0], [1], [0, 0, 1, 1], [], []>} : vector<8x32xbf16>, vector<32x8xbf16>, vector<8x8xf32> -> vector<8x8xf32>
    %70 = vector.broadcast %3 : f32 to vector<8x8xf32>
    %71 = arith.mulf %69, %70 : vector<8x8xf32>
    %c1_37 = arith.constant 1 : index
    %c0_38 = arith.constant 0 : index
    %c0_39 = arith.constant 0 : index
    %72 = vector.load %arg5[%c1_37, %c0_38, %c0_39] : memref<4x32x8xbf16, #tpu.memory_space<vmem>>, vector<1x32x8xbf16>
    %73 = vector.shape_cast %72 : vector<1x32x8xbf16> to vector<32x8xbf16>
    %cst_40 = arith.constant dense<0.000000e+00> : vector<8x8xf32>
    %74 = tpu.matmul %28, %73, %cst_40 {dimension_numbers = #tpu.dot_dimension_numbers<[1], [0], [0], [1], [0, 0, 1, 1], [], []>} : vector<8x32xbf16>, vector<32x8xbf16>, vector<8x8xf32> -> vector<8x8xf32>
    %c1_41 = arith.constant 1 : index
    %c0_42 = arith.constant 0 : index
    %c0_43 = arith.constant 0 : index
    %75 = vector.load %arg6[%c1_41, %c0_42, %c0_43] : memref<4x32x8xbf16, #tpu.memory_space<vmem>>, vector<1x32x8xbf16>
    %76 = vector.shape_cast %75 : vector<1x32x8xbf16> to vector<32x8xbf16>
    %cst_44 = arith.constant dense<0.000000e+00> : vector<8x8xf32>
    %77 = tpu.matmul %28, %76, %cst_44 {dimension_numbers = #tpu.dot_dimension_numbers<[1], [0], [0], [1], [0, 0, 1, 1], [], []>} : vector<8x32xbf16>, vector<32x8xbf16>, vector<8x8xf32> -> vector<8x8xf32>
    %78 = arith.truncf %71 : vector<8x8xf32> to vector<8x8xbf16>
    %79 = arith.truncf %74 : vector<8x8xf32> to vector<8x8xbf16>
    %cst_45 = arith.constant dense<0.000000e+00> : vector<8x8xf32>
    %80 = tpu.matmul %78, %79, %cst_45 {dimension_numbers = #tpu.dot_dimension_numbers<[1], [1], [0], [0], [0, 0, 1, 0], [], []>} : vector<8x8xbf16>, vector<8x8xbf16>, vector<8x8xf32> -> vector<8x8xf32>
    %cst_46 = arith.constant 0xFF800000 : f32
    %81 = vector.broadcast %cst_46 : f32 to vector<8x8xf32>
    %82 = arith.select %31, %80, %81 : vector<8x8xi1>, vector<8x8xf32>
    %cst_47 = arith.constant dense<0xFF800000> : vector<8xf32>
    %83 = vector.multi_reduction <maximumf>, %82, %cst_47 [1] : vector<8x8xf32> to vector<8xf32>
    %84 = vector.shape_cast %83 : vector<8xf32> to vector<8x1xf32>
    %85 = vector.broadcast %84 : vector<8x1xf32> to vector<8x8xf32>
    %86 = arith.subf %82, %85 : vector<8x8xf32>
    %87 = math.exp %86 : vector<8x8xf32>
    %cst_48 = arith.constant dense<0.000000e+00> : vector<8xf32>
    %88 = vector.multi_reduction <add>, %87, %cst_48 [1] : vector<8x8xf32> to vector<8xf32>
    %89 = vector.shape_cast %88 : vector<8xf32> to vector<8x1xf32>
    %90 = tpu.reciprocal %89 {approx = true} : vector<8x1xf32> -> vector<8x1xf32>
    %91 = vector.broadcast %90 : vector<8x1xf32> to vector<8x8xf32>
    %92 = arith.mulf %87, %91 : vector<8x8xf32>
    %93 = arith.truncf %92 : vector<8x8xf32> to vector<8x8xbf16>
    %94 = arith.truncf %77 : vector<8x8xf32> to vector<8x8xbf16>
    %cst_49 = arith.constant dense<0.000000e+00> : vector<8x8xf32>
    %95 = tpu.matmul %93, %94, %cst_49 {dimension_numbers = #tpu.dot_dimension_numbers<[1], [0], [0], [1], [0, 0, 1, 1], [], []>} : vector<8x8xbf16>, vector<8x8xbf16>, vector<8x8xf32> -> vector<8x8xf32>
    %96 = arith.truncf %95 : vector<8x8xf32> to vector<8x8xbf16>
    %c1_50 = arith.constant 1 : index
    %c0_51 = arith.constant 0 : index
    %c0_52 = arith.constant 0 : index
    %97 = vector.load %arg7[%c1_50, %c0_51, %c0_52] : memref<4x8x32xbf16, #tpu.memory_space<vmem>>, vector<1x8x32xbf16>
    %98 = vector.shape_cast %97 : vector<1x8x32xbf16> to vector<8x32xbf16>
    %cst_53 = arith.constant dense<0.000000e+00> : vector<8x32xf32>
    %99 = tpu.matmul %96, %98, %cst_53 {dimension_numbers = #tpu.dot_dimension_numbers<[1], [0], [0], [1], [0, 0, 1, 1], [], []>} : vector<8x8xbf16>, vector<8x32xbf16>, vector<8x32xf32> -> vector<8x32xf32>
    %100 = arith.addf %66, %99 : vector<8x32xf32>
    %c2 = arith.constant 2 : index
    %c0_54 = arith.constant 0 : index
    %c0_55 = arith.constant 0 : index
    %101 = vector.load %arg4[%c2, %c0_54, %c0_55] : memref<4x32x8xbf16, #tpu.memory_space<vmem>>, vector<1x32x8xbf16>
    %102 = vector.shape_cast %101 : vector<1x32x8xbf16> to vector<32x8xbf16>
    %cst_56 = arith.constant dense<0.000000e+00> : vector<8x8xf32>
    %103 = tpu.matmul %28, %102, %cst_56 {dimension_numbers = #tpu.dot_dimension_numbers<[1], [0], [0], [1], [0, 0, 1, 1], [], []>} : vector<8x32xbf16>, vector<32x8xbf16>, vector<8x8xf32> -> vector<8x8xf32>
    %104 = vector.broadcast %3 : f32 to vector<8x8xf32>
    %105 = arith.mulf %103, %104 : vector<8x8xf32>
    %c2_57 = arith.constant 2 : index
    %c0_58 = arith.constant 0 : index
    %c0_59 = arith.constant 0 : index
    %106 = vector.load %arg5[%c2_57, %c0_58, %c0_59] : memref<4x32x8xbf16, #tpu.memory_space<vmem>>, vector<1x32x8xbf16>
    %107 = vector.shape_cast %106 : vector<1x32x8xbf16> to vector<32x8xbf16>
    %cst_60 = arith.constant dense<0.000000e+00> : vector<8x8xf32>
    %108 = tpu.matmul %28, %107, %cst_60 {dimension_numbers = #tpu.dot_dimension_numbers<[1], [0], [0], [1], [0, 0, 1, 1], [], []>} : vector<8x32xbf16>, vector<32x8xbf16>, vector<8x8xf32> -> vector<8x8xf32>
    %c2_61 = arith.constant 2 : index
    %c0_62 = arith.constant 0 : index
    %c0_63 = arith.constant 0 : index
    %109 = vector.load %arg6[%c2_61, %c0_62, %c0_63] : memref<4x32x8xbf16, #tpu.memory_space<vmem>>, vector<1x32x8xbf16>
    %110 = vector.shape_cast %109 : vector<1x32x8xbf16> to vector<32x8xbf16>
    %cst_64 = arith.constant dense<0.000000e+00> : vector<8x8xf32>
    %111 = tpu.matmul %28, %110, %cst_64 {dimension_numbers = #tpu.dot_dimension_numbers<[1], [0], [0], [1], [0, 0, 1, 1], [], []>} : vector<8x32xbf16>, vector<32x8xbf16>, vector<8x8xf32> -> vector<8x8xf32>
    %112 = arith.truncf %105 : vector<8x8xf32> to vector<8x8xbf16>
    %113 = arith.truncf %108 : vector<8x8xf32> to vector<8x8xbf16>
    %cst_65 = arith.constant dense<0.000000e+00> : vector<8x8xf32>
    %114 = tpu.matmul %112, %113, %cst_65 {dimension_numbers = #tpu.dot_dimension_numbers<[1], [1], [0], [0], [0, 0, 1, 0], [], []>} : vector<8x8xbf16>, vector<8x8xbf16>, vector<8x8xf32> -> vector<8x8xf32>
    %cst_66 = arith.constant 0xFF800000 : f32
    %115 = vector.broadcast %cst_66 : f32 to vector<8x8xf32>
    %116 = arith.select %31, %114, %115 : vector<8x8xi1>, vector<8x8xf32>
    %cst_67 = arith.constant dense<0xFF800000> : vector<8xf32>
    %117 = vector.multi_reduction <maximumf>, %116, %cst_67 [1] : vector<8x8xf32> to vector<8xf32>
    %118 = vector.shape_cast %117 : vector<8xf32> to vector<8x1xf32>
    %119 = vector.broadcast %118 : vector<8x1xf32> to vector<8x8xf32>
    %120 = arith.subf %116, %119 : vector<8x8xf32>
    %121 = math.exp %120 : vector<8x8xf32>
    %cst_68 = arith.constant dense<0.000000e+00> : vector<8xf32>
    %122 = vector.multi_reduction <add>, %121, %cst_68 [1] : vector<8x8xf32> to vector<8xf32>
    %123 = vector.shape_cast %122 : vector<8xf32> to vector<8x1xf32>
    %124 = tpu.reciprocal %123 {approx = true} : vector<8x1xf32> -> vector<8x1xf32>
    %125 = vector.broadcast %124 : vector<8x1xf32> to vector<8x8xf32>
    %126 = arith.mulf %121, %125 : vector<8x8xf32>
    %127 = arith.truncf %126 : vector<8x8xf32> to vector<8x8xbf16>
    %128 = arith.truncf %111 : vector<8x8xf32> to vector<8x8xbf16>
    %cst_69 = arith.constant dense<0.000000e+00> : vector<8x8xf32>
    %129 = tpu.matmul %127, %128, %cst_69 {dimension_numbers = #tpu.dot_dimension_numbers<[1], [0], [0], [1], [0, 0, 1, 1], [], []>} : vector<8x8xbf16>, vector<8x8xbf16>, vector<8x8xf32> -> vector<8x8xf32>
    %130 = arith.truncf %129 : vector<8x8xf32> to vector<8x8xbf16>
    %c2_70 = arith.constant 2 : index
    %c0_71 = arith.constant 0 : index
    %c0_72 = arith.constant 0 : index
    %131 = vector.load %arg7[%c2_70, %c0_71, %c0_72] : memref<4x8x32xbf16, #tpu.memory_space<vmem>>, vector<1x8x32xbf16>
    %132 = vector.shape_cast %131 : vector<1x8x32xbf16> to vector<8x32xbf16>
    %cst_73 = arith.constant dense<0.000000e+00> : vector<8x32xf32>
    %133 = tpu.matmul %130, %132, %cst_73 {dimension_numbers = #tpu.dot_dimension_numbers<[1], [0], [0], [1], [0, 0, 1, 1], [], []>} : vector<8x8xbf16>, vector<8x32xbf16>, vector<8x32xf32> -> vector<8x32xf32>
    %134 = arith.addf %100, %133 : vector<8x32xf32>
    %c3 = arith.constant 3 : index
    %c0_74 = arith.constant 0 : index
    %c0_75 = arith.constant 0 : index
    %135 = vector.load %arg4[%c3, %c0_74, %c0_75] : memref<4x32x8xbf16, #tpu.memory_space<vmem>>, vector<1x32x8xbf16>
    %136 = vector.shape_cast %135 : vector<1x32x8xbf16> to vector<32x8xbf16>
    %cst_76 = arith.constant dense<0.000000e+00> : vector<8x8xf32>
    %137 = tpu.matmul %28, %136, %cst_76 {dimension_numbers = #tpu.dot_dimension_numbers<[1], [0], [0], [1], [0, 0, 1, 1], [], []>} : vector<8x32xbf16>, vector<32x8xbf16>, vector<8x8xf32> -> vector<8x8xf32>
    %138 = vector.broadcast %3 : f32 to vector<8x8xf32>
    %139 = arith.mulf %137, %138 : vector<8x8xf32>
    %c3_77 = arith.constant 3 : index
    %c0_78 = arith.constant 0 : index
    %c0_79 = arith.constant 0 : index
    %140 = vector.load %arg5[%c3_77, %c0_78, %c0_79] : memref<4x32x8xbf16, #tpu.memory_space<vmem>>, vector<1x32x8xbf16>
    %141 = vector.shape_cast %140 : vector<1x32x8xbf16> to vector<32x8xbf16>
    %cst_80 = arith.constant dense<0.000000e+00> : vector<8x8xf32>
    %142 = tpu.matmul %28, %141, %cst_80 {dimension_numbers = #tpu.dot_dimension_numbers<[1], [0], [0], [1], [0, 0, 1, 1], [], []>} : vector<8x32xbf16>, vector<32x8xbf16>, vector<8x8xf32> -> vector<8x8xf32>
    %c3_81 = arith.constant 3 : index
    %c0_82 = arith.constant 0 : index
    %c0_83 = arith.constant 0 : index
    %143 = vector.load %arg6[%c3_81, %c0_82, %c0_83] : memref<4x32x8xbf16, #tpu.memory_space<vmem>>, vector<1x32x8xbf16>
    %144 = vector.shape_cast %143 : vector<1x32x8xbf16> to vector<32x8xbf16>
    %cst_84 = arith.constant dense<0.000000e+00> : vector<8x8xf32>
    %145 = tpu.matmul %28, %144, %cst_84 {dimension_numbers = #tpu.dot_dimension_numbers<[1], [0], [0], [1], [0, 0, 1, 1], [], []>} : vector<8x32xbf16>, vector<32x8xbf16>, vector<8x8xf32> -> vector<8x8xf32>
    %146 = arith.truncf %139 : vector<8x8xf32> to vector<8x8xbf16>
    %147 = arith.truncf %142 : vector<8x8xf32> to vector<8x8xbf16>
    %cst_85 = arith.constant dense<0.000000e+00> : vector<8x8xf32>
    %148 = tpu.matmul %146, %147, %cst_85 {dimension_numbers = #tpu.dot_dimension_numbers<[1], [1], [0], [0], [0, 0, 1, 0], [], []>} : vector<8x8xbf16>, vector<8x8xbf16>, vector<8x8xf32> -> vector<8x8xf32>
    %cst_86 = arith.constant 0xFF800000 : f32
    %149 = vector.broadcast %cst_86 : f32 to vector<8x8xf32>
    %150 = arith.select %31, %148, %149 : vector<8x8xi1>, vector<8x8xf32>
    %cst_87 = arith.constant dense<0xFF800000> : vector<8xf32>
    %151 = vector.multi_reduction <maximumf>, %150, %cst_87 [1] : vector<8x8xf32> to vector<8xf32>
    %152 = vector.shape_cast %151 : vector<8xf32> to vector<8x1xf32>
    %153 = vector.broadcast %152 : vector<8x1xf32> to vector<8x8xf32>
    %154 = arith.subf %150, %153 : vector<8x8xf32>
    %155 = math.exp %154 : vector<8x8xf32>
    %cst_88 = arith.constant dense<0.000000e+00> : vector<8xf32>
    %156 = vector.multi_reduction <add>, %155, %cst_88 [1] : vector<8x8xf32> to vector<8xf32>
    %157 = vector.shape_cast %156 : vector<8xf32> to vector<8x1xf32>
    %158 = tpu.reciprocal %157 {approx = true} : vector<8x1xf32> -> vector<8x1xf32>
    %159 = vector.broadcast %158 : vector<8x1xf32> to vector<8x8xf32>
    %160 = arith.mulf %155, %159 : vector<8x8xf32>
    %161 = arith.truncf %160 : vector<8x8xf32> to vector<8x8xbf16>
    %162 = arith.truncf %145 : vector<8x8xf32> to vector<8x8xbf16>
    %cst_89 = arith.constant dense<0.000000e+00> : vector<8x8xf32>
    %163 = tpu.matmul %161, %162, %cst_89 {dimension_numbers = #tpu.dot_dimension_numbers<[1], [0], [0], [1], [0, 0, 1, 1], [], []>} : vector<8x8xbf16>, vector<8x8xbf16>, vector<8x8xf32> -> vector<8x8xf32>
    %164 = arith.truncf %163 : vector<8x8xf32> to vector<8x8xbf16>
    %c3_90 = arith.constant 3 : index
    %c0_91 = arith.constant 0 : index
    %c0_92 = arith.constant 0 : index
    %165 = vector.load %arg7[%c3_90, %c0_91, %c0_92] : memref<4x8x32xbf16, #tpu.memory_space<vmem>>, vector<1x8x32xbf16>
    %166 = vector.shape_cast %165 : vector<1x8x32xbf16> to vector<8x32xbf16>
    %cst_93 = arith.constant dense<0.000000e+00> : vector<8x32xf32>
    %167 = tpu.matmul %164, %166, %cst_93 {dimension_numbers = #tpu.dot_dimension_numbers<[1], [0], [0], [1], [0, 0, 1, 1], [], []>} : vector<8x8xbf16>, vector<8x32xbf16>, vector<8x32xf32> -> vector<8x32xf32>
    %168 = arith.addf %134, %167 : vector<8x32xf32>
    %169 = arith.addf %1, %168 : vector<8x32xf32>
    %c0_94 = arith.constant 0 : index
    %c0_95 = arith.constant 0 : index
    %170 = vector.load %arg8[%c0_94, %c0_95] : memref<1x32xf32, #tpu.memory_space<vmem>>, vector<1x32xf32>
    %171 = vector.broadcast %170 : vector<1x32xf32> to vector<8x32xf32>
    %172 = arith.addf %169, %171 : vector<8x32xf32>
    %c0_96 = arith.constant 0 : index
    %c0_97 = arith.constant 0 : index
    %173 = vector.load %arg9[%c0_96, %c0_97] : memref<1x32xf32, #tpu.memory_space<vmem>>, vector<1x32xf32>
    %c0_98 = arith.constant 0 : index
    %c0_99 = arith.constant 0 : index
    %174 = vector.load %arg10[%c0_98, %c0_99] : memref<1x32xf32, #tpu.memory_space<vmem>>, vector<1x32xf32>
    %cst_100 = arith.constant dense<0.000000e+00> : vector<8xf32>
    %175 = vector.multi_reduction <add>, %172, %cst_100 [1] : vector<8x32xf32> to vector<8xf32>
    %176 = vector.shape_cast %175 : vector<8xf32> to vector<8x1xf32>
    %cst_101 = arith.constant 3.200000e+01 : f32
    %177 = vector.broadcast %cst_101 : f32 to vector<8x1xf32>
    %178 = arith.divf %176, %177 : vector<8x1xf32>
    %179 = vector.broadcast %178 : vector<8x1xf32> to vector<8x32xf32>
    %180 = arith.subf %172, %179 : vector<8x32xf32>
    %181 = arith.mulf %180, %180 : vector<8x32xf32>
    %cst_102 = arith.constant dense<0.000000e+00> : vector<8xf32>
    %182 = vector.multi_reduction <add>, %181, %cst_102 [1] : vector<8x32xf32> to vector<8xf32>
    %183 = vector.shape_cast %182 : vector<8xf32> to vector<8x1xf32>
    %cst_103 = arith.constant 3.200000e+01 : f32
    %184 = vector.broadcast %cst_103 : f32 to vector<8x1xf32>
    %185 = arith.divf %183, %184 : vector<8x1xf32>
    %186 = vector.broadcast %178 : vector<8x1xf32> to vector<8x32xf32>
    %187 = arith.subf %172, %186 : vector<8x32xf32>
    %188 = vector.broadcast %173 : vector<1x32xf32> to vector<8x32xf32>
    %189 = arith.mulf %188, %187 : vector<8x32xf32>
    %cst_104 = arith.constant 9.99999974E-6 : f32
    %190 = vector.broadcast %cst_104 : f32 to vector<8x1xf32>
    %191 = arith.addf %185, %190 : vector<8x1xf32>
    %192 = math.rsqrt %191 : vector<8x1xf32>
    %193 = vector.broadcast %192 : vector<8x1xf32> to vector<8x32xf32>
    %194 = arith.mulf %189, %193 : vector<8x32xf32>
    %195 = vector.broadcast %174 : vector<1x32xf32> to vector<8x32xf32>
    %196 = arith.addf %194, %195 : vector<8x32xf32>
    %197 = arith.truncf %196 : vector<8x32xf32> to vector<8x32xbf16>
    %cst_105 = arith.constant 0.000000e+00 : f32
    %198 = vector.broadcast %cst_105 : f32 to vector<8x32xf32>
    %c0_106 = arith.constant 0 : index
    %c0_107 = arith.constant 0 : index
    %c0_108 = arith.constant 0 : index
    %199 = vector.load %arg11[%c0_106, %c0_107, %c0_108] : memref<1x32x128xbf16, #tpu.memory_space<vmem>>, vector<1x32x128xbf16>
    %200 = vector.shape_cast %199 : vector<1x32x128xbf16> to vector<32x128xbf16>
    %cst_109 = arith.constant dense<0.000000e+00> : vector<8x128xf32>
    %201 = tpu.matmul %197, %200, %cst_109 {dimension_numbers = #tpu.dot_dimension_numbers<[1], [0], [0], [1], [0, 0, 1, 1], [], []>} : vector<8x32xbf16>, vector<32x128xbf16>, vector<8x128xf32> -> vector<8x128xf32>
    %c0_110 = arith.constant 0 : index
    %c0_111 = arith.constant 0 : index
    %c0_112 = arith.constant 0 : index
    %202 = vector.load %arg12[%c0_110, %c0_111, %c0_112] : memref<1x1x128xf32, #tpu.memory_space<vmem>>, vector<1x1x128xf32>
    %203 = vector.shape_cast %202 : vector<1x1x128xf32> to vector<1x128xf32>
    %204 = vector.broadcast %203 : vector<1x128xf32> to vector<8x128xf32>
    %205 = arith.addf %201, %204 : vector<8x128xf32>
    %cst_113 = arith.constant 5.000000e-01 : f32
    %206 = vector.broadcast %cst_113 : f32 to vector<8x128xf32>
    %207 = arith.mulf %206, %205 : vector<8x128xf32>
    %cst_114 = arith.constant 0.636619746 : f32
    %208 = math.sqrt %cst_114 : f32
    %209 = arith.mulf %205, %205 : vector<8x128xf32>
    %210 = arith.mulf %205, %209 : vector<8x128xf32>
    %cst_115 = arith.constant 4.471500e-02 : f32
    %211 = vector.broadcast %cst_115 : f32 to vector<8x128xf32>
    %212 = arith.mulf %211, %210 : vector<8x128xf32>
    %213 = arith.addf %205, %212 : vector<8x128xf32>
    %214 = vector.broadcast %208 : f32 to vector<8x128xf32>
    %215 = arith.mulf %214, %213 : vector<8x128xf32>
    %216 = math.tanh %215 : vector<8x128xf32>
    %cst_116 = arith.constant 1.000000e+00 : f32
    %217 = vector.broadcast %cst_116 : f32 to vector<8x128xf32>
    %218 = arith.addf %217, %216 : vector<8x128xf32>
    %219 = arith.mulf %207, %218 : vector<8x128xf32>
    %220 = arith.truncf %219 : vector<8x128xf32> to vector<8x128xbf16>
    %c0_117 = arith.constant 0 : index
    %c0_118 = arith.constant 0 : index
    %c0_119 = arith.constant 0 : index
    %221 = vector.load %arg13[%c0_117, %c0_118, %c0_119] : memref<1x128x32xbf16, #tpu.memory_space<vmem>>, vector<1x128x32xbf16>
    %222 = vector.shape_cast %221 : vector<1x128x32xbf16> to vector<128x32xbf16>
    %cst_120 = arith.constant dense<0.000000e+00> : vector<8x32xf32>
    %223 = tpu.matmul %220, %222, %cst_120 {dimension_numbers = #tpu.dot_dimension_numbers<[1], [0], [0], [1], [0, 0, 1, 1], [], []>} : vector<8x128xbf16>, vector<128x32xbf16>, vector<8x32xf32> -> vector<8x32xf32>
    %224 = arith.addf %198, %223 : vector<8x32xf32>
    %225 = arith.addf %172, %224 : vector<8x32xf32>
    %c0_121 = arith.constant 0 : index
    %c0_122 = arith.constant 0 : index
    %226 = vector.load %arg14[%c0_121, %c0_122] : memref<1x32xf32, #tpu.memory_space<vmem>>, vector<1x32xf32>
    %227 = vector.broadcast %226 : vector<1x32xf32> to vector<8x32xf32>
    %228 = arith.addf %225, %227 : vector<8x32xf32>
    %c0_123 = arith.constant 0 : index
    %c0_124 = arith.constant 0 : index
    %c0_125 = arith.constant 0 : index
    %229 = vector.load %arg15[%c0_123, %c0_124, %c0_125] : memref<1x8x32xf32, #tpu.memory_space<vmem>>, vector<1x8x32xf32>
    %230 = vector.shape_cast %229 : vector<1x8x32xf32> to vector<8x32xf32>
    %231 = vector.shape_cast %228 : vector<8x32xf32> to vector<1x8x32xf32>
    tpu.vector_store %arg15[%c0_123, %c0_124, %c0_125], %231 {strides = array<i32>} : memref<1x8x32xf32, #tpu.memory_space<vmem>>, vector<1x8x32xf32>,
    return
  }
  func.func @transform_0(%arg0: i32) -> (i32, i32, i32) {
    %c0_i32 = arith.constant 0 : i32
    %c0_i32_0 = arith.constant 0 : i32
    %c0_i32_1 = arith.constant 0 : i32
    return %arg0, %c0_i32, %c0_i32_0 : i32, i32, i32
  }
  func.func @transform_1(%arg0: i32) -> (i32, i32) {
    %c0_i32 = arith.constant 0 : i32
    %c0_i32_0 = arith.constant 0 : i32
    %c0_i32_1 = arith.constant 0 : i32
    return %c0_i32, %c0_i32_0 : i32, i32
  }
  func.func @transform_2(%arg0: i32) -> (i32, i32) {
    %c0_i32 = arith.constant 0 : i32
    %c0_i32_0 = arith.constant 0 : i32
    %c0_i32_1 = arith.constant 0 : i32
    return %c0_i32, %c0_i32_0 : i32, i32
  }
  func.func @transform_3(%arg0: i32) -> (i32, i32, i32) {
    %c0_i32 = arith.constant 0 : i32
    %c0_i32_0 = arith.constant 0 : i32
    %c0_i32_1 = arith.constant 0 : i32
    %c0_i32_2 = arith.constant 0 : i32
    return %c0_i32, %c0_i32_0, %c0_i32_1 : i32, i32, i32
  }
  func.func @transform_4(%arg0: i32) -> (i32, i32, i32) {
    %c0_i32 = arith.constant 0 : i32
    %c0_i32_0 = arith.constant 0 : i32
    %c0_i32_1 = arith.constant 0 : i32
    %c0_i32_2 = arith.constant 0 : i32
    return %c0_i32, %c0_i32_0, %c0_i32_1 : i32, i32, i32
  }
  func.func @transform_5(%arg0: i32) -> (i32, i32, i32) {
    %c0_i32 = arith.constant 0 : i32
    %c0_i32_0 = arith.constant 0 : i32
    %c0_i32_1 = arith.constant 0 : i32
    %c0_i32_2 = arith.constant 0 : i32
    return %c0_i32, %c0_i32_0, %c0_i32_1 : i32, i32, i32
  }
  func.func @transform_6(%arg0: i32) -> (i32, i32, i32) {
    %c0_i32 = arith.constant 0 : i32
    %c0_i32_0 = arith.constant 0 : i32
    %c0_i32_1 = arith.constant 0 : i32
    %c0_i32_2 = arith.constant 0 : i32
    return %c0_i32, %c0_i32_0, %c0_i32_1 : i32, i32, i32
  }
  func.func @transform_7(%arg0: i32) -> (i32, i32) {
    %c0_i32 = arith.constant 0 : i32
    %c0_i32_0 = arith.constant 0 : i32
    %c0_i32_1 = arith.constant 0 : i32
    return %c0_i32, %c0_i32_0 : i32, i32
  }
  func.func @transform_8(%arg0: i32) -> (i32, i32) {
    %c0_i32 = arith.constant 0 : i32
    %c0_i32_0 = arith.constant 0 : i32
    %c0_i32_1 = arith.constant 0 : i32
    return %c0_i32, %c0_i32_0 : i32, i32
  }
  func.func @transform_9(%arg0: i32) -> (i32, i32) {
    %c0_i32 = arith.constant 0 : i32
    %c0_i32_0 = arith.constant 0 : i32
    %c0_i32_1 = arith.constant 0 : i32
    return %c0_i32, %c0_i32_0 : i32, i32
  }
  func.func @transform_10(%arg0: i32) -> (i32, i32, i32) {
    %c0_i32 = arith.constant 0 : i32
    %c0_i32_0 = arith.constant 0 : i32
    %c0_i32_1 = arith.constant 0 : i32
    %c0_i32_2 = arith.constant 0 : i32
    return %c0_i32, %c0_i32_0, %c0_i32_1 : i32, i32, i32
  }
  func.func @transform_11(%arg0: i32) -> (i32, i32, i32) {
    %c0_i32 = arith.constant 0 : i32
    %c0_i32_0 = arith.constant 0 : i32
    %c0_i32_1 = arith.constant 0 : i32
    %c0_i32_2 = arith.constant 0 : i32
    return %c0_i32, %c0_i32_0, %c0_i32_1 : i32, i32, i32
  }
  func.func @transform_12(%arg0: i32) -> (i32, i32, i32) {
    %c0_i32 = arith.constant 0 : i32
    %c0_i32_0 = arith.constant 0 : i32
    %c0_i32_1 = arith.constant 0 : i32
    %c0_i32_2 = arith.constant 0 : i32
    return %c0_i32, %c0_i32_0, %c0_i32_1 : i32, i32, i32
  }
  func.func @transform_13(%arg0: i32) -> (i32, i32) {
    %c0_i32 = arith.constant 0 : i32
    %c0_i32_0 = arith.constant 0 : i32
    %c0_i32_1 = arith.constant 0 : i32
    return %c0_i32, %c0_i32_0 : i32, i32
  }
  func.func @transform_14(%arg0: i32) -> (i32, i32, i32) {
    %c0_i32 = arith.constant 0 : i32
    %c0_i32_0 = arith.constant 0 : i32
    %c0_i32_1 = arith.constant 0 : i32
    return %arg0, %c0_i32, %c0_i32_0 : i32, i32, i32
  }
}

</mosaic_0001>

<llo_original>
// kernel: tpu_custom_call.1
$region0: #{tpu_custom_call.1}
  #allocation0 [shape = 'u32[]', space=smem, size = 0x4, offset = 0x4, fixed_abs, tag = 'smem constant byte address 0x4 - core index']
  #allocation1 [shape = 'u32[144,128]{1,0:T(1,128)}', space=vmem, size = 0x12000, scoped, tag = 'internal scratch']
  %s0 = inlined_call_operand.vmem [shape: f32[2,8,32], index: 0, kind: input, shape index: {}]
  %s1 = inlined_call_operand.vmem [shape: f32[1,32], index: 1, kind: input, shape index: {}]
  %s2 = inlined_call_operand.vmem [shape: f32[1,32], index: 2, kind: input, shape index: {}]
  %s3 = inlined_call_operand.vmem [shape: bf16[4,32,8], index: 3, kind: input, shape index: {}]
  %s4 = inlined_call_operand.vmem [shape: bf16[4,32,8], index: 4, kind: input, shape index: {}]
  %s5 = inlined_call_operand.vmem [shape: bf16[4,32,8], index: 5, kind: input, shape index: {}]
  %s6 = inlined_call_operand.vmem [shape: bf16[4,8,32], index: 6, kind: input, shape index: {}]
  %s7 = inlined_call_operand.vmem [shape: f32[1,32], index: 7, kind: input, shape index: {}]
  %s8 = inlined_call_operand.vmem [shape: f32[1,32], index: 8, kind: input, shape index: {}]
  %s9 = inlined_call_operand.vmem [shape: f32[1,32], index: 9, kind: input, shape index: {}]
  %s10 = inlined_call_operand.vmem [shape: bf16[1,32,128], index: 10, kind: input, shape index: {}]
  %s11 = inlined_call_operand.vmem [shape: f32[1,1,128], index: 11, kind: input, shape index: {}]
  %s12 = inlined_call_operand.vmem [shape: bf16[1,128,32], index: 12, kind: input, shape index: {}]
  %s13 = inlined_call_operand.vmem [shape: f32[1,32], index: 13, kind: input, shape index: {}]
  %s14 = inlined_call_operand.hbm [shape: f32[2,8,32], index: 14, kind: output, shape index: {}]
  %s15 = sld [smem:[#allocation0]]
  $region89: #{tpu_custom_call.1} parent=0
    _
  %s17 = ssub.s32 1, %s15
  %s18 = scalar_select 0, %s17, %s15
  $region1: #{tpu_custom_call.1} parent=0
    #allocation2 [shape = 'u8[8192]{0}', space=vmem, size = 0x2000, scoped, tag = 'output window, operand 0']
    #allocation3 [shape = 's32[2]{0}', space=sflag, size = 0x8, scoped, tag = 'scoped memory for tpu_custom_call.1']
    %19 = vsyncpa [#allocation3], 0
    %s20 = scalar_lea.sflag [#allocation3], 1
    %21 = vsyncpa %s20, 0
    loop: start=0, step=1, limit=4
    $region2: #{tpu_custom_call.1} parent=1 // loop_pre_header
      _
    $region3: #{tpu_custom_call.1} parent=1 // loop_header
      %s23 = sphi 0, %s27
      %p24 = scmp.ge.s32.totalorder %s23, 4
      %s33 = sphi 0, %s35
      %s36 = sphi 0, %s33
      %s37 = sphi 0, %s36
      %s53 = sphi 0, %s37
      %s57 = sphi 0, %s57
      %s59 = sphi 0, %s57
      %s60 = sphi 0, %s59
      %s74 = sphi 0, %s60
      %s78 = sphi 0, %s78
      %s80 = sphi 0, %s78
      %s81 = sphi 0, %s80
      %s95 = sphi 0, %s81
      %s99 = sphi 0, %s99
      %s101 = sphi 0, %s99
      %s102 = sphi 0, %s101
      %s116 = sphi 0, %s102
      %s120 = sphi 0, %s120
      %s122 = sphi 0, %s120
      %s123 = sphi 0, %s122
      %s137 = sphi 0, %s123
      %s141 = sphi 0, %s141
      %s143 = sphi 0, %s141
      %s144 = sphi 0, %s143
      %s158 = sphi 0, %s144
      %s162 = sphi 0, %s162
      %s164 = sphi 0, %s162
      %s165 = sphi 0, %s164
      %s179 = sphi 0, %s165
      %s183 = sphi 0, %s183
      %s185 = sphi 0, %s183
      %s186 = sphi 0, %s185
      %s200 = sphi 0, %s186
      %s204 = sphi 0, %s204
      %s206 = sphi 0, %s204
      %s207 = sphi 0, %s206
      %s221 = sphi 0, %s207
      %s225 = sphi 0, %s225
      %s227 = sphi 0, %s225
      %s228 = sphi 0, %s227
      %s242 = sphi 0, %s228
      %s246 = sphi 0, %s246
      %s248 = sphi 0, %s246
      %s249 = sphi 0, %s248
      %s263 = sphi 0, %s249
      %s267 = sphi 0, %s267
      %s269 = sphi 0, %s267
      %s270 = sphi 0, %s269
      %s284 = sphi 0, %s270
      %s288 = sphi 0, %s288
      %s290 = sphi 0, %s288
      %s291 = sphi 0, %s290
      %s305 = sphi 0, %s291
      %s309 = sphi 0, %s309
      %s311 = sphi 0, %s309
      %s312 = sphi 0, %s311
      %s326 = sphi 0, %s312
      %s332 = sphi 0, %s334
      %s335 = sphi 0, %s332
      %s336 = sphi 0, %s335
      %s352 = sphi 0, %s336
    $region4: #{tpu_custom_call.1} parent=1 // loop_header_branch
      %26 = sbr.rel (%p24) target = $region8
    $region5: #{tpu_custom_call.1} parent=1 // loop_body
      %s28 = ssub.s32 %s23, 1
      %s29 = ssub.s32 %s23, 2
      %s30 = sadd.s32 %s23, 1
      %s31 = ssub.s32 %s23, %s30
      %p32 = scmp.eq.s32.totalorder %s31, 0
      %s34 = sadd.s32 %s33, 1
      %s35 = scalar_select %p32, %s33, %s34
      %p38 = pneg %p32
      %p39 = scmp.eq.s32.totalorder %s23, 1
      %p40 = por %p38, %p39
      %p41 = scmp.ne.s32.totalorder %s33, %s36
      %p42 = scmp.eq.s32.totalorder %s23, 0
      %p43 = por %p41, %p42
      %p44 = scmp.ne.s32.totalorder %s33, %s36
      %p45 = scmp.eq.s32.totalorder %s28, 1
      %p46 = por %p44, %p45
      %p47 = scmp.ne.s32.totalorder %s36, %s37
      %p48 = scmp.eq.s32.totalorder %s28, 0
      %p49 = por %p47, %p48
      %p50 = scmp.ne.s32.totalorder %s36, %s37
      %p51 = scmp.eq.s32.totalorder %s29, 1
      %p52 = por %p50, %p51
      %p54 = scmp.ne.s32.totalorder %s37, %s53
      %p55 = scmp.eq.s32.totalorder %s29, 0
      %p56 = por %p54, %p55
      %s58 = sadd.s32 %s57, 1
      %p61 = scmp.eq.s32.totalorder %s23, 1
      %p62 = scmp.ne.s32.totalorder %s57, %s59
      %p63 = scmp.eq.s32.totalorder %s23, 0
      %p64 = por %p62, %p63
      %p65 = scmp.ne.s32.totalorder %s57, %s59
      %p66 = scmp.eq.s32.totalorder %s28, 1
      %p67 = por %p65, %p66
      %p68 = scmp.ne.s32.totalorder %s59, %s60
      %p69 = scmp.eq.s32.totalorder %s28, 0
      %p70 = por %p68, %p69
      %p71 = scmp.ne.s32.totalorder %s59, %s60
      %p72 = scmp.eq.s32.totalorder %s29, 1
      %p73 = por %p71, %p72
      %p75 = scmp.ne.s32.totalorder %s60, %s74
      %p76 = scmp.eq.s32.totalorder %s29, 0
      %p77 = por %p75, %p76
      %s79 = sadd.s32 %s78, 1
      %p82 = scmp.eq.s32.totalorder %s23, 1
      %p83 = scmp.ne.s32.totalorder %s78, %s80
      %p84 = scmp.eq.s32.totalorder %s23, 0
      %p85 = por %p83, %p84
      %p86 = scmp.ne.s32.totalorder %s78, %s80
      %p87 = scmp.eq.s32.totalorder %s28, 1
      %p88 = por %p86, %p87
      %p89 = scmp.ne.s32.totalorder %s80, %s81
      %p90 = scmp.eq.s32.totalorder %s28, 0
      %p91 = por %p89, %p90
      %p92 = scmp.ne.s32.totalorder %s80, %s81
      %p93 = scmp.eq.s32.totalorder %s29, 1
      %p94 = por %p92, %p93
      %p96 = scmp.ne.s32.totalorder %s81, %s95
      %p97 = scmp.eq.s32.totalorder %s29, 0
      %p98 = por %p96, %p97
      %s100 = sadd.s32 %s99, 1
      %p103 = scmp.eq.s32.totalorder %s23, 1
      %p104 = scmp.ne.s32.totalorder %s99, %s101
      %p105 = scmp.eq.s32.totalorder %s23, 0
      %p106 = por %p104, %p105
      %p107 = scmp.ne.s32.totalorder %s99, %s101
      %p108 = scmp.eq.s32.totalorder %s28, 1
      %p109 = por %p107, %p108
      %p110 = scmp.ne.s32.totalorder %s101, %s102
      %p111 = scmp.eq.s32.totalorder %s28, 0
      %p112 = por %p110, %p111
      %p113 = scmp.ne.s32.totalorder %s101, %s102
      %p114 = scmp.eq.s32.totalorder %s29, 1
      %p115 = por %p113, %p114
      %p117 = scmp.ne.s32.totalorder %s102, %s116
      %p118 = scmp.eq.s32.totalorder %s29, 0
      %p119 = por %p117, %p118
      %s121 = sadd.s32 %s120, 1
      %p124 = scmp.eq.s32.totalorder %s23, 1
      %p125 = scmp.ne.s32.totalorder %s120, %s122
      %p126 = scmp.eq.s32.totalorder %s23, 0
      %p127 = por %p125, %p126
      %p128 = scmp.ne.s32.totalorder %s120, %s122
      %p129 = scmp.eq.s32.totalorder %s28, 1
      %p130 = por %p128, %p129
      %p131 = scmp.ne.s32.totalorder %s122, %s123
      %p132 = scmp.eq.s32.totalorder %s28, 0
      %p133 = por %p131, %p132
      %p134 = scmp.ne.s32.totalorder %s122, %s123
      %p135 = scmp.eq.s32.totalorder %s29, 1
      %p136 = por %p134, %p135
      %p138 = scmp.ne.s32.totalorder %s123, %s137
      %p139 = scmp.eq.s32.totalorder %s29, 0
      %p140 = por %p138, %p139
      %s142 = sadd.s32 %s141, 1
      %p145 = scmp.eq.s32.totalorder %s23, 1
      %p146 = scmp.ne.s32.totalorder %s141, %s143
      %p147 = scmp.eq.s32.totalorder %s23, 0
      %p148 = por %p146, %p147
      %p149 = scmp.ne.s32.totalorder %s141, %s143
      %p150 = scmp.eq.s32.totalorder %s28, 1
      %p151 = por %p149, %p150
      %p152 = scmp.ne.s32.totalorder %s143, %s144
      %p153 = scmp.eq.s32.totalorder %s28, 0
      %p154 = por %p152, %p153
      %p155 = scmp.ne.s32.totalorder %s143, %s144
      %p156 = scmp.eq.s32.totalorder %s29, 1
      %p157 = por %p155, %p156
      %p159 = scmp.ne.s32.totalorder %s144, %s158
      %p160 = scmp.eq.s32.totalorder %s29, 0
      %p161 = por %p159, %p160
      %s163 = sadd.s32 %s162, 1
      %p166 = scmp.eq.s32.totalorder %s23, 1
      %p167 = scmp.ne.s32.totalorder %s162, %s164
      %p168 = scmp.eq.s32.totalorder %s23, 0
      %p169 = por %p167, %p168
      %p170 = scmp.ne.s32.totalorder %s162, %s164
      %p171 = scmp.eq.s32.totalorder %s28, 1
      %p172 = por %p170, %p171
      %p173 = scmp.ne.s32.totalorder %s164, %s165
      %p174 = scmp.eq.s32.totalorder %s28, 0
      %p175 = por %p173, %p174
      %p176 = scmp.ne.s32.totalorder %s164, %s165
      %p177 = scmp.eq.s32.totalorder %s29, 1
      %p178 = por %p176, %p177
      %p180 = scmp.ne.s32.totalorder %s165, %s179
      %p181 = scmp.eq.s32.totalorder %s29, 0
      %p182 = por %p180, %p181
      %s184 = sadd.s32 %s183, 1
      %p187 = scmp.eq.s32.totalorder %s23, 1
      %p188 = scmp.ne.s32.totalorder %s183, %s185
      %p189 = scmp.eq.s32.totalorder %s23, 0
      %p190 = por %p188, %p189
      %p191 = scmp.ne.s32.totalorder %s183, %s185
      %p192 = scmp.eq.s32.totalorder %s28, 1
      %p193 = por %p191, %p192
      %p194 = scmp.ne.s32.totalorder %s185, %s186
      %p195 = scmp.eq.s32.totalorder %s28, 0
      %p196 = por %p194, %p195
      %p197 = scmp.ne.s32.totalorder %s185, %s186
      %p198 = scmp.eq.s32.totalorder %s29, 1
      %p199 = por %p197, %p198
      %p201 = scmp.ne.s32.totalorder %s186, %s200
      %p202 = scmp.eq.s32.totalorder %s29, 0
      %p203 = por %p201, %p202
      %s205 = sadd.s32 %s204, 1
      %p208 = scmp.eq.s32.totalorder %s23, 1
      %p209 = scmp.ne.s32.totalorder %s204, %s206
      %p210 = scmp.eq.s32.totalorder %s23, 0
      %p211 = por %p209, %p210
      %p212 = scmp.ne.s32.totalorder %s204, %s206
      %p213 = scmp.eq.s32.totalorder %s28, 1
      %p214 = por %p212, %p213
      %p215 = scmp.ne.s32.totalorder %s206, %s207
      %p216 = scmp.eq.s32.totalorder %s28, 0
      %p217 = por %p215, %p216
      %p218 = scmp.ne.s32.totalorder %s206, %s207
      %p219 = scmp.eq.s32.totalorder %s29, 1
      %p220 = por %p218, %p219
      %p222 = scmp.ne.s32.totalorder %s207, %s221
      %p223 = scmp.eq.s32.totalorder %s29, 0
      %p224 = por %p222, %p223
      %s226 = sadd.s32 %s225, 1
      %p229 = scmp.eq.s32.totalorder %s23, 1
      %p230 = scmp.ne.s32.totalorder %s225, %s227
      %p231 = scmp.eq.s32.totalorder %s23, 0
      %p232 = por %p230, %p231
      %p233 = scmp.ne.s32.totalorder %s225, %s227
      %p234 = scmp.eq.s32.totalorder %s28, 1
      %p235 = por %p233, %p234
      %p236 = scmp.ne.s32.totalorder %s227, %s228
      %p237 = scmp.eq.s32.totalorder %s28, 0
      %p238 = por %p236, %p237
      %p239 = scmp.ne.s32.totalorder %s227, %s228
      %p240 = scmp.eq.s32.totalorder %s29, 1
      %p241 = por %p239, %p240
      %p243 = scmp.ne.s32.totalorder %s228, %s242
      %p244 = scmp.eq.s32.totalorder %s29, 0
      %p245 = por %p243, %p244
      %s247 = sadd.s32 %s246, 1
      %p250 = scmp.eq.s32.totalorder %s23, 1
      %p251 = scmp.ne.s32.totalorder %s246, %s248
      %p252 = scmp.eq.s32.totalorder %s23, 0
      %p253 = por %p251, %p252
      %p254 = scmp.ne.s32.totalorder %s246, %s248
      %p255 = scmp.eq.s32.totalorder %s28, 1
      %p256 = por %p254, %p255
      %p257 = scmp.ne.s32.totalorder %s248, %s249
      %p258 = scmp.eq.s32.totalorder %s28, 0
      %p259 = por %p257, %p258
      %p260 = scmp.ne.s32.totalorder %s248, %s249
      %p261 = scmp.eq.s32.totalorder %s29, 1
      %p262 = por %p260, %p261
      %p264 = scmp.ne.s32.totalorder %s249, %s263
      %p265 = scmp.eq.s32.totalorder %s29, 0
      %p266 = por %p264, %p265
      %s268 = sadd.s32 %s267, 1
      %p271 = scmp.eq.s32.totalorder %s23, 1
      %p272 = scmp.ne.s32.totalorder %s267, %s269
      %p273 = scmp.eq.s32.totalorder %s23, 0
      %p274 = por %p272, %p273
      %p275 = scmp.ne.s32.totalorder %s267, %s269
      %p276 = scmp.eq.s32.totalorder %s28, 1
      %p277 = por %p275, %p276
      %p278 = scmp.ne.s32.totalorder %s269, %s270
      %p279 = scmp.eq.s32.totalorder %s28, 0
      %p280 = por %p278, %p279
      %p281 = scmp.ne.s32.totalorder %s269, %s270
      %p282 = scmp.eq.s32.totalorder %s29, 1
      %p283 = por %p281, %p282
      %p285 = scmp.ne.s32.totalorder %s270, %s284
      %p286 = scmp.eq.s32.totalorder %s29, 0
      %p287 = por %p285, %p286
      %s289 = sadd.s32 %s288, 1
      %p292 = scmp.eq.s32.totalorder %s23, 1
      %p293 = scmp.ne.s32.totalorder %s288, %s290
      %p294 = scmp.eq.s32.totalorder %s23, 0
      %p295 = por %p293, %p294
      %p296 = scmp.ne.s32.totalorder %s288, %s290
      %p297 = scmp.eq.s32.totalorder %s28, 1
      %p298 = por %p296, %p297
      %p299 = scmp.ne.s32.totalorder %s290, %s291
      %p300 = scmp.eq.s32.totalorder %s28, 0
      %p301 = por %p299, %p300
      %p302 = scmp.ne.s32.totalorder %s290, %s291
      %p303 = scmp.eq.s32.totalorder %s29, 1
      %p304 = por %p302, %p303
      %p306 = scmp.ne.s32.totalorder %s291, %s305
      %p307 = scmp.eq.s32.totalorder %s29, 0
      %p308 = por %p306, %p307
      %s310 = sadd.s32 %s309, 1
      %p313 = scmp.eq.s32.totalorder %s23, 1
      %p314 = scmp.ne.s32.totalorder %s309, %s311
      %p315 = scmp.eq.s32.totalorder %s23, 0
      %p316 = por %p314, %p315
      %p317 = scmp.ne.s32.totalorder %s309, %s311
      %p318 = scmp.eq.s32.totalorder %s28, 1
      %p319 = por %p317, %p318
      %p320 = scmp.ne.s32.totalorder %s311, %s312
      %p321 = scmp.eq.s32.totalorder %s28, 0
      %p322 = por %p320, %p321
      %p323 = scmp.ne.s32.totalorder %s311, %s312
      %p324 = scmp.eq.s32.totalorder %s29, 1
      %p325 = por %p323, %p324
      %p327 = scmp.ne.s32.totalorder %s312, %s326
      %p328 = scmp.eq.s32.totalorder %s29, 0
      %p329 = por %p327, %p328
      %s330 = ssub.s32 %s23, %s30
      %p331 = scmp.eq.s32.totalorder %s330, 0
      %s333 = sadd.s32 %s332, 1
      %s334 = scalar_select %p331, %s332, %s333
      %p337 = pneg %p331
      %p338 = scmp.eq.s32.totalorder %s23, 1
      %p339 = por %p337, %p338
      %p340 = scmp.ne.s32.totalorder %s332, %s335
      %p341 = scmp.eq.s32.totalorder %s23, 0
      %p342 = por %p340, %p341
      %p343 = scmp.ne.s32.totalorder %s332, %s335
      %p344 = scmp.eq.s32.totalorder %s28, 1
      %p345 = por %p343, %p344
      %p346 = scmp.ne.s32.totalorder %s335, %s336
      %p347 = scmp.eq.s32.totalorder %s28, 0
      %p348 = por %p346, %p347
      %p349 = scmp.ne.s32.totalorder %s335, %s336
      %p350 = scmp.eq.s32.totalorder %s29, 1
      %p351 = por %p349, %p350
      %p353 = scmp.ne.s32.totalorder %s336, %s352
      %p354 = scmp.eq.s32.totalorder %s29, 0
      %p355 = por %p353, %p354
      %p356 = scmp.le.s32.totalorder 1, %s23
      %p357 = scmp.lt.s32.totalorder %s23, 3
      %p358 = pnand %p356, %p357
      %p359 = pneg %p358
      // Predicated region
      $region9: #{tpu_custom_call.1} parent=5 // pred_check
        _
      $region10: #{tpu_custom_call.1} parent=5 // pred_check_branch
        %361 = sbr.rel (%p358) target = $region12
      $region11: #{tpu_custom_call.1} parent=5 // pred_region
        %s362 = ssub.s32 %s23, 1
        // Predicated region
        $region13: #{tpu_custom_call.1} parent=11 // pred_check
          %p363 = pneg %p70
        $region14: #{tpu_custom_call.1} parent=11 // pred_check_branch
          %365 = sbr.rel (%p363) target = $region16
        $region15: #{tpu_custom_call.1} parent=11 // pred_region
          _
        $region16: #{tpu_custom_call.1} parent=11 // pred_fallthru
          _
        // Predicated region
        $region17: #{tpu_custom_call.1} parent=11 // pred_check
          %p366 = pneg %p91
        $region18: #{tpu_custom_call.1} parent=11 // pred_check_branch
          %368 = sbr.rel (%p366) target = $region20
        $region19: #{tpu_custom_call.1} parent=11 // pred_region
          _
        $region20: #{tpu_custom_call.1} parent=11 // pred_fallthru
          _
        // Predicated region
        $region21: #{tpu_custom_call.1} parent=11 // pred_check
          %p369 = pneg %p112
        $region22: #{tpu_custom_call.1} parent=11 // pred_check_branch
          %371 = sbr.rel (%p369) target = $region24
        $region23: #{tpu_custom_call.1} parent=11 // pred_region
          _
        $region24: #{tpu_custom_call.1} parent=11 // pred_fallthru
          _
        // Predicated region
        $region25: #{tpu_custom_call.1} parent=11 // pred_check
          %p372 = pneg %p133
        $region26: #{tpu_custom_call.1} parent=11 // pred_check_branch
          %374 = sbr.rel (%p372) target = $region28
        $region27: #{tpu_custom_call.1} parent=11 // pred_region
          _
        $region28: #{tpu_custom_call.1} parent=11 // pred_fallthru
          _
        // Predicated region
        $region29: #{tpu_custom_call.1} parent=11 // pred_check
          %p375 = pneg %p154
        $region30: #{tpu_custom_call.1} parent=11 // pred_check_branch
          %377 = sbr.rel (%p375) target = $region32
        $region31: #{tpu_custom_call.1} parent=11 // pred_region
          _
        $region32: #{tpu_custom_call.1} parent=11 // pred_fallthru
          _
        // Predicated region
        $region33: #{tpu_custom_call.1} parent=11 // pred_check
          %p378 = pneg %p175
        $region34: #{tpu_custom_call.1} parent=11 // pred_check_branch
          %380 = sbr.rel (%p378) target = $region36
        $region35: #{tpu_custom_call.1} parent=11 // pred_region
          _
        $region36: #{tpu_custom_call.1} parent=11 // pred_fallthru
          _
        // Predicated region
        $region37: #{tpu_custom_call.1} parent=11 // pred_check
          %p381 = pneg %p196
        $region38: #{tpu_custom_call.1} parent=11 // pred_check_branch
          %383 = sbr.rel (%p381) target = $region40
        $region39: #{tpu_custom_call.1} parent=11 // pred_region
          _
        $region40: #{tpu_custom_call.1} parent=11 // pred_fallthru
          _
        // Predicated region
        $region41: #{tpu_custom_call.1} parent=11 // pred_check
          %p384 = pneg %p217
        $region42: #{tpu_custom_call.1} parent=11 // pred_check_branch
          %386 = sbr.rel (%p384) target = $region44
        $region43: #{tpu_custom_call.1} parent=11 // pred_region
          _
        $region44: #{tpu_custom_call.1} parent=11 // pred_fallthru
          _
        // Predicated region
        $region45: #{tpu_custom_call.1} parent=11 // pred_check
          %p387 = pneg %p238
        $region46: #{tpu_custom_call.1} parent=11 // pred_check_branch
          %389 = sbr.rel (%p387) target = $region48
        $region47: #{tpu_custom_call.1} parent=11 // pred_region
          _
        $region48: #{tpu_custom_call.1} parent=11 // pred_fallthru
          _
        // Predicated region
        $region49: #{tpu_custom_call.1} parent=11 // pred_check
          %p390 = pneg %p259
        $region50: #{tpu_custom_call.1} parent=11 // pred_check_branch
          %392 = sbr.rel (%p390) target = $region52
        $region51: #{tpu_custom_call.1} parent=11 // pred_region
          _
        $region52: #{tpu_custom_call.1} parent=11 // pred_fallthru
          _
        // Predicated region
        $region53: #{tpu_custom_call.1} parent=11 // pred_check
          %p393 = pneg %p280
        $region54: #{tpu_custom_call.1} parent=11 // pred_check_branch
          %395 = sbr.rel (%p393) target = $region56
        $region55: #{tpu_custom_call.1} parent=11 // pred_region
          _
        $region56: #{tpu_custom_call.1} parent=11 // pred_fallthru
          _
        // Predicated region
        $region57: #{tpu_custom_call.1} parent=11 // pred_check
          %p396 = pneg %p301
        $region58: #{tpu_custom_call.1} parent=11 // pred_check_branch
          %398 = sbr.rel (%p396) target = $region60
        $region59: #{tpu_custom_call.1} parent=11 // pred_region
          _
        $region60: #{tpu_custom_call.1} parent=11 // pred_fallthru
          _
        // Predicated region
        $region61: #{tpu_custom_call.1} parent=11 // pred_check
          %p399 = pneg %p322
        $region62: #{tpu_custom_call.1} parent=11 // pred_check_branch
          %401 = sbr.rel (%p399) target = $region64
        $region63: #{tpu_custom_call.1} parent=11 // pred_region
          _
        $region64: #{tpu_custom_call.1} parent=11 // pred_fallthru
          _
      $region12: #{tpu_custom_call.1} parent=5 // pred_fallthru
        _
      %p402 = scmp.lt.s32.totalorder %s23, 2
      // Predicated region
      $region65: #{tpu_custom_call.1} parent=5 // pred_check
        %p403 = pneg %p402
      $region66: #{tpu_custom_call.1} parent=5 // pred_check_branch
        %405 = sbr.rel (%p403) target = $region68
      $region67: #{tpu_custom_call.1} parent=5 // pred_region
        // Predicated region
        $region69: #{tpu_custom_call.1} parent=67 // pred_check
          %p406 = pneg %p43
        $region70: #{tpu_custom_call.1} parent=67 // pred_check_branch
          %408 = sbr.rel (%p406) target = $region72
        $region71: #{tpu_custom_call.1} parent=67 // pred_region
          %p409 = scmp.lt.s32.totalorder %s23, 1
          %s410 = scalar_select %p409, %s23, 1
          %s411 = smul.addr %s410, 8
          %s412 = scalar_lea.vmem %s0, %s411
        $region72: #{tpu_custom_call.1} parent=67 // pred_fallthru
          _
      $region68: #{tpu_custom_call.1} parent=5 // pred_fallthru
        _
      %p413 = scmp.le.s32.totalorder 1, %s23
      %p414 = scmp.lt.s32.totalorder %s23, 3
      %p415 = pnand %p413, %p414
      %p416 = pneg %p415
      // Predicated region
      $region73: #{tpu_custom_call.1} parent=5 // pred_check
        _
      $region74: #{tpu_custom_call.1} parent=5 // pred_check_branch
        %418 = sbr.rel (%p415) target = $region76
      $region75: #{tpu_custom_call.1} parent=5 // pred_region
        %s419 = ssub.s32 %s23, 1
        %p420 = scmp.lt.s32.totalorder %s28, 1
        %s421 = scalar_select %p420, %s28, 1
        %s422 = smul.addr %s421, 8
        %s423 = scalar_lea.vmem %s0, %s422
        %p424 = pneg %p49
        %p425 = pneg %p46
        %p426 = pneg %p70
        %p427 = pneg %p67
        %p428 = pneg %p91
        %p429 = pneg %p88
        %p430 = pneg %p112
        %p431 = pneg %p109
        %p432 = pneg %p133
        %p433 = pneg %p130
        %p434 = pneg %p154
        %p435 = pneg %p151
        %p436 = pneg %p175
        %p437 = pneg %p172
        %p438 = pneg %p196
        %p439 = pneg %p193
        %p440 = pneg %p217
        %p441 = pneg %p214
        %p442 = pneg %p238
        %p443 = pneg %p235
        %p444 = pneg %p259
        %p445 = pneg %p256
        %p446 = pneg %p280
        %p447 = pneg %p277
        %p448 = pneg %p301
        %p449 = pneg %p298
        %p450 = pneg %p322
        %p451 = pneg %p319
        %p452 = pneg %p348
        %p453 = pneg %p345
        %s454 = sand.u32 %s335, 1
        %s455 = scalar_lea.sflag [#allocation3], %s454
        %s456 = sand.u32 %s335, 1
        %s457 = smul.addr %s456, 8
        %s458 = scalar_lea.vmem [#allocation2], %s457
        %p459 = scmp.lt.s32.totalorder %s28, 1
        %s460 = scalar_select %p459, %s28, 1
        %s461 = smul.addr %s460, 8
        %s462 = scalar_lea.vmem %s0, %s461
        %v464 = vld [vmem:[%s462] sm:$0xff]
        %v465 = vld [vmem:[%s1] sm:$0x1]
        %v466 = vld [vmem:[%s2] sm:$0x1]
        %vm467 = vcmask 261120
        %v468 = vsel %vm467, %v464, 0.0
        %469 = vadd.xlane.f32.xlu0 %v468
        %v470 = vpop.xlane.xlu0 %469
        %v471 = vrcp.pop 32.0
        %v472 = vmul.f32 %v470, %v471
        %v473 = vsub.f32 %v464, %v472
        %v474 = vmul.f32 %v473, %v473
        %v475 = vsel %vm467, %v474, 0.0
        %476 = vadd.xlane.f32.xlu0 %v475
        %v477 = vpop.xlane.xlu0 %476
        %v478 = vmul.f32 %v477, %v471
        %v480 = vlaneseq
        %v481 = vshrl.u32 %v480, 7
        %v482 = vsub.s32 0, %v481
        %v483 = vrot.slane %v465, %v482
        %v485 = vmul.f32 %v483, %v473
        %v486 = vadd.f32 %v478, 1e-05
        %v487 = vrsqrt.pop %v486
        %v488 = vmul.f32 %v485, %v487
        %v490 = vlaneseq
        %v491 = vshrl.u32 %v490, 7
        %v492 = vsub.s32 0, %v491
        %v493 = vrot.slane %v466, %v492
        %v495 = vadd.f32 %v488, %v493
        %v496 = vpack.c.bf16 %v495, %v495
        %v497 = vlaneseq
        %v498 = vshrl.u32 %v497, 7
        %v499 = vlaneseq
        %v500 = vand.u32 %v499, 127
        %vm501 = vcmp.ge.s32.totalorder %v498, %v500
        %v502 = vld [vmem:[%s3] sm:$0xf]
        %v503 = vld [vmem:[%s3 + $0x4] sm:$0xf]
        %v504 = vld [vmem:[%s3 + $0x8] sm:$0xf]
        %v505 = vld [vmem:[%s3 + $0xc] sm:$0xf]
        %v510 = vunpack.c.l.b16 %v502
        %v511 = vunpack.c.l.b16 %v503
        %v512 = vunpack.c.l.b16 %v504
        %v513 = vunpack.c.l.b16 %v505
        %v514 = vpack.c.b16 %v511, %v510
        %v515 = vpack.c.b16 %v513, %v512
        %v519 = vsel %vm467, %v496, 0
        %521 = vmatprep.subr.bf16.mxu0 0
        %522 = vmatpush1.bf16.msra.mxu0 %v514
        %523 = vmatprep.subr.bf16.mxu0 0
        %524 = vmatpush1.bf16.msra.mxu0 %v515
        %525 = vmatprep.subr.bf16.mxu0 0
        %526 = vmatpush1.bf16.msra.mxu0 0
        %527 = vmatprep.subr.bf16.mxu0 0
        %528 = vmatpush1.bf16.msra.mxu0 0
        %529 = vmatprep.subr.bf16.mxu0 0
        %530 = vmatpush1.bf16.msra.mxu0 0
        %531 = vmatprep.subr.bf16.mxu0 0
        %532 = vmatpush1.bf16.msra.mxu0 0
        %533 = vmatprep.subr.bf16.mxu0 0
        %534 = vmatpush1.bf16.msra.mxu0 0
        %535 = vmatprep.subr.bf16.mxu0 0
        %536 = vmatpush1.bf16.msra.mxu0 0
        %537 = vmatprep.subr.bf16.mxu0 0
        %538 = vmatpush1.bf16.msra.mxu0 0
        %539 = vmatprep.subr.bf16.mxu0 0
        %540 = vmatpush1.bf16.msra.mxu0 0
        %541 = vmatprep.subr.bf16.mxu0 0
        %542 = vmatpush1.bf16.msra.mxu0 0
        %543 = vmatprep.subr.bf16.mxu0 0
        %544 = vmatpush1.bf16.msra.mxu0 0
        %545 = vmatprep.subr.bf16.mxu0 0
        %546 = vmatpush1.bf16.msra.mxu0 0
        %547 = vmatprep.subr.bf16.mxu0 0
        %548 = vmatpush1.bf16.msra.mxu0 0
        %549 = vmatprep.subr.bf16.mxu0 0
        %550 = vmatpush1.bf16.msra.mxu0 0
        %551 = vmatprep.subr.bf16.mxu0 0
        %552 = vmatpush1.bf16.msra.mxu0 0
        %553 = vmatprep.mubr.bf16.mxu0 0
        %554 = vmatmul.mubr.bf16.gmra.mrb[0].mxu0 %v519
        %v555 = vpop.f32.mrb[0].mxu0
        %v556 = vadd.f32 0.0, %v555
        %v557 = vpop.f32.mrb[0].mxu0
        %v558 = vpop.f32.mrb[0].mxu0
        %v559 = vpop.f32.mrb[0].mxu0
        %560 = vdwg.mxu0
        %v561 = vmul.f32 %v556, 0.35355338
        %v562 = vld [vmem:[%s4] sm:$0xf]
        %v563 = vld [vmem:[%s4 + $0x4] sm:$0xf]
        %v564 = vld [vmem:[%s4 + $0x8] sm:$0xf]
        %v565 = vld [vmem:[%s4 + $0xc] sm:$0xf]
        %v570 = vunpack.c.l.b16 %v562
        %v571 = vunpack.c.l.b16 %v563
        %v572 = vunpack.c.l.b16 %v564
        %v573 = vunpack.c.l.b16 %v565
        %v574 = vpack.c.b16 %v571, %v570
        %v575 = vpack.c.b16 %v573, %v572
        %578 = vmatprep.subr.bf16.mxu0 0
        %579 = vmatpush1.bf16.msra.mxu0 %v574
        %580 = vmatprep.subr.bf16.mxu0 0
        %581 = vmatpush1.bf16.msra.mxu0 %v575
        %582 = vmatprep.subr.bf16.mxu0 0
        %583 = vmatpush1.bf16.msra.mxu0 0
        %584 = vmatprep.subr.bf16.mxu0 0
        %585 = vmatpush1.bf16.msra.mxu0 0
        %586 = vmatprep.subr.bf16.mxu0 0
        %587 = vmatpush1.bf16.msra.mxu0 0
        %588 = vmatprep.subr.bf16.mxu0 0
        %589 = vmatpush1.bf16.msra.mxu0 0
        %590 = vmatprep.subr.bf16.mxu0 0
        %591 = vmatpush1.bf16.msra.mxu0 0
        %592 = vmatprep.subr.bf16.mxu0 0
        %593 = vmatpush1.bf16.msra.mxu0 0
        %594 = vmatprep.subr.bf16.mxu0 0
        %595 = vmatpush1.bf16.msra.mxu0 0
        %596 = vmatprep.subr.bf16.mxu0 0
        %597 = vmatpush1.bf16.msra.mxu0 0
        %598 = vmatprep.subr.bf16.mxu0 0
        %599 = vmatpush1.bf16.msra.mxu0 0
        %600 = vmatprep.subr.bf16.mxu0 0
        %601 = vmatpush1.bf16.msra.mxu0 0
        %602 = vmatprep.subr.bf16.mxu0 0
        %603 = vmatpush1.bf16.msra.mxu0 0
        %604 = vmatprep.subr.bf16.mxu0 0
        %605 = vmatpush1.bf16.msra.mxu0 0
        %606 = vmatprep.subr.bf16.mxu0 0
        %607 = vmatpush1.bf16.msra.mxu0 0
        %608 = vmatprep.subr.bf16.mxu0 0
        %609 = vmatpush1.bf16.msra.mxu0 0
        %610 = vmatprep.mubr.bf16.mxu0 0
        %611 = vmatmul.mubr.bf16.gmra.mrb[0].mxu0 %v519
        %v612 = vpop.f32.mrb[0].mxu0
        %v613 = vadd.f32 0.0, %v612
        %v614 = vpop.f32.mrb[0].mxu0
        %v615 = vpop.f32.mrb[0].mxu0
        %v616 = vpop.f32.mrb[0].mxu0
        %617 = vdwg.mxu0
        %v618 = vld [vmem:[%s5] sm:$0xf]
        %v619 = vld [vmem:[%s5 + $0x4] sm:$0xf]
        %v620 = vld [vmem:[%s5 + $0x8] sm:$0xf]
        %v621 = vld [vmem:[%s5 + $0xc] sm:$0xf]
        %v626 = vunpack.c.l.b16 %v618
        %v627 = vunpack.c.l.b16 %v619
        %v628 = vunpack.c.l.b16 %v620
        %v629 = vunpack.c.l.b16 %v621
        %v630 = vpack.c.b16 %v627, %v626
        %v631 = vpack.c.b16 %v629, %v628
        %634 = vmatprep.subr.bf16.mxu0 0
        %635 = vmatpush1.bf16.msra.mxu0 %v630
        %636 = vmatprep.subr.bf16.mxu0 0
        %637 = vmatpush1.bf16.msra.mxu0 %v631
        %638 = vmatprep.subr.bf16.mxu0 0
        %639 = vmatpush1.bf16.msra.mxu0 0
        %640 = vmatprep.subr.bf16.mxu0 0
        %641 = vmatpush1.bf16.msra.mxu0 0
        %642 = vmatprep.subr.bf16.mxu0 0
        %643 = vmatpush1.bf16.msra.mxu0 0
        %644 = vmatprep.subr.bf16.mxu0 0
        %645 = vmatpush1.bf16.msra.mxu0 0
        %646 = vmatprep.subr.bf16.mxu0 0
        %647 = vmatpush1.bf16.msra.mxu0 0
        %648 = vmatprep.subr.bf16.mxu0 0
        %649 = vmatpush1.bf16.msra.mxu0 0
        %650 = vmatprep.subr.bf16.mxu0 0
        %651 = vmatpush1.bf16.msra.mxu0 0
        %652 = vmatprep.subr.bf16.mxu0 0
        %653 = vmatpush1.bf16.msra.mxu0 0
        %654 = vmatprep.subr.bf16.mxu0 0
        %655 = vmatpush1.bf16.msra.mxu0 0
        %656 = vmatprep.subr.bf16.mxu0 0
        %657 = vmatpush1.bf16.msra.mxu0 0
        %658 = vmatprep.subr.bf16.mxu0 0
        %659 = vmatpush1.bf16.msra.mxu0 0
        %660 = vmatprep.subr.bf16.mxu0 0
        %661 = vmatpush1.bf16.msra.mxu0 0
        %662 = vmatprep.subr.bf16.mxu0 0
        %663 = vmatpush1.bf16.msra.mxu0 0
        %664 = vmatprep.subr.bf16.mxu0 0
        %665 = vmatpush1.bf16.msra.mxu0 0
        %666 = vmatprep.mubr.bf16.mxu0 0
        %667 = vmatmul.mubr.bf16.gmra.mrb[0].mxu0 %v519
        %v668 = vpop.f32.mrb[0].mxu0
        %v669 = vadd.f32 0.0, %v668
        %v670 = vpop.f32.mrb[0].mxu0
        %v671 = vpop.f32.mrb[0].mxu0
        %v672 = vpop.f32.mrb[0].mxu0
        %673 = vdwg.mxu0
        %v674 = vpack.c.bf16 %v561, %v561
        %v675 = vpack.c.bf16 %v613, %v613
        %vm676 = vcmask 64512
        %v678 = vsel %vm676, %v674, 0
        %v681 = vsel %vm676, %v675, 0
        %683 = vmatprep.subr.bf16.mxu0 0
        %684 = vmatpush1.bf16.xpose.msra.mxu0 %v681
        %685 = vmatprep.subr.bf16.mxu0 0
        %686 = vmatpush1.bf16.xpose.msra.mxu0 0
        %687 = vmatprep.subr.bf16.mxu0 0
        %688 = vmatpush1.bf16.xpose.msra.mxu0 0
        %689 = vmatprep.subr.bf16.mxu0 0
        %690 = vmatpush1.bf16.xpose.msra.mxu0 0
        %691 = vmatprep.subr.bf16.mxu0 0
        %692 = vmatpush1.bf16.xpose.msra.mxu0 0
        %693 = vmatprep.subr.bf16.mxu0 0
        %694 = vmatpush1.bf16.xpose.msra.mxu0 0
        %695 = vmatprep.subr.bf16.mxu0 0
        %696 = vmatpush1.bf16.xpose.msra.mxu0 0
        %697 = vmatprep.subr.bf16.mxu0 0
        %698 = vmatpush1.bf16.xpose.msra.mxu0 0
        %699 = vmatprep.subr.bf16.mxu0 0
        %700 = vmatpush1.bf16.xpose.msra.mxu0 0
        %701 = vmatprep.subr.bf16.mxu0 0
        %702 = vmatpush1.bf16.xpose.msra.mxu0 0
        %703 = vmatprep.subr.bf16.mxu0 0
        %704 = vmatpush1.bf16.xpose.msra.mxu0 0
        %705 = vmatprep.subr.bf16.mxu0 0
        %706 = vmatpush1.bf16.xpose.msra.mxu0 0
        %707 = vmatprep.subr.bf16.mxu0 0
        %708 = vmatpush1.bf16.xpose.msra.mxu0 0
        %709 = vmatprep.subr.bf16.mxu0 0
        %710 = vmatpush1.bf16.xpose.msra.mxu0 0
        %711 = vmatprep.subr.bf16.mxu0 0
        %712 = vmatpush1.bf16.xpose.msra.mxu0 0
        %713 = vmatprep.subr.bf16.mxu0 0
        %714 = vmatpush1.bf16.xpose.msra.mxu0 0
        %715 = vmatprep.mubr.bf16.mxu0 0
        %716 = vmatmul.mubr.bf16.gmra.mrb[0].mxu0 %v678
        %v717 = vpop.f32.mrb[0].mxu0
        %v718 = vadd.f32 0.0, %v717
        %v719 = vpop.f32.mrb[0].mxu0
        %v720 = vpop.f32.mrb[0].mxu0
        %v721 = vpop.f32.mrb[0].mxu0
        %722 = vdwg.mxu0
        %v723 = vsel %vm501, %v718, -inf
        %v724 = vsel %vm676, %v723, -inf
        %725 = vmax.xlane.f32.xlu0 %v724
        %v726 = vpop.xlane.xlu0 %725
        %v727 = vsub.f32 %v723, %v726
        %v728 = vmul.f32 %v727, 1.442695
        %v729 = vpow.pop %v728
        %v730 = vsel %vm676, %v729, 0.0
        %731 = vadd.xlane.f32.xlu0 %v730
        %v732 = vpop.xlane.xlu0 %731
        %v733 = vrcp.pop %v732
        %v734 = vmul.f32 %v729, %v733
        %v735 = vpack.c.bf16 %v734, %v734
        %v736 = vpack.c.bf16 %v669, %v669
        %v738 = vsel %vm676, %v735, 0
        %vm740 = vcmask 1043456
        %v742 = vsel %vm740, %v736, 0
        %744 = vmatprep.subr.bf16.mxu0 0
        %745 = vmatpush1.bf16.msra.mxu0 %v742
        %746 = vmatprep.subr.bf16.mxu0 0
        %747 = vmatpush1.bf16.msra.mxu0 0
        %748 = vmatprep.subr.bf16.mxu0 0
        %749 = vmatpush1.bf16.msra.mxu0 0
        %750 = vmatprep.subr.bf16.mxu0 0
        %751 = vmatpush1.bf16.msra.mxu0 0
        %752 = vmatprep.subr.bf16.mxu0 0
        %753 = vmatpush1.bf16.msra.mxu0 0
        %754 = vmatprep.subr.bf16.mxu0 0
        %755 = vmatpush1.bf16.msra.mxu0 0
        %756 = vmatprep.subr.bf16.mxu0 0
        %757 = vmatpush1.bf16.msra.mxu0 0
        %758 = vmatprep.subr.bf16.mxu0 0
        %759 = vmatpush1.bf16.msra.mxu0 0
        %760 = vmatprep.subr.bf16.mxu0 0
        %761 = vmatpush1.bf16.msra.mxu0 0
        %762 = vmatprep.subr.bf16.mxu0 0
        %763 = vmatpush1.bf16.msra.mxu0 0
        %764 = vmatprep.subr.bf16.mxu0 0
        %765 = vmatpush1.bf16.msra.mxu0 0
        %766 = vmatprep.subr.bf16.mxu0 0
        %767 = vmatpush1.bf16.msra.mxu0 0
        %768 = vmatprep.subr.bf16.mxu0 0
        %769 = vmatpush1.bf16.msra.mxu0 0
        %770 = vmatprep.subr.bf16.mxu0 0
        %771 = vmatpush1.bf16.msra.mxu0 0
        %772 = vmatprep.subr.bf16.mxu0 0
        %773 = vmatpush1.bf16.msra.mxu0 0
        %774 = vmatprep.subr.bf16.mxu0 0
        %775 = vmatpush1.bf16.msra.mxu0 0
        %776 = vmatprep.mubr.bf16.mxu0 0
        %777 = vmatmul.mubr.bf16.gmra.mrb[0].mxu0 %v738
        %v778 = vpop.f32.mrb[0].mxu0
        %v779 = vadd.f32 0.0, %v778
        %v780 = vpop.f32.mrb[0].mxu0
        %v781 = vpop.f32.mrb[0].mxu0
        %v782 = vpop.f32.mrb[0].mxu0
        %783 = vdwg.mxu0
        %v784 = vpack.c.bf16 %v779, %v779
        %v785 = vld [vmem:[%s6] sm:$0xf]
        %s786 = scalar_lea.vmem %s3, 16
        %v787 = vld [vmem:[%s786] sm:$0xf]
        %v788 = vld [vmem:[%s786 + $0x4] sm:$0xf]
        %v789 = vld [vmem:[%s786 + $0x8] sm:$0xf]
        %v790 = vld [vmem:[%s786 + $0xc] sm:$0xf]
        %v795 = vunpack.c.l.b16 %v787
        %v796 = vunpack.c.l.b16 %v788
        %v797 = vunpack.c.l.b16 %v789
        %v798 = vunpack.c.l.b16 %v790
        %v799 = vpack.c.b16 %v796, %v795
        %v800 = vpack.c.b16 %v798, %v797
        %803 = vmatprep.subr.bf16.mxu0 0
        %804 = vmatpush1.bf16.msra.mxu0 %v799
        %805 = vmatprep.subr.bf16.mxu0 0
        %806 = vmatpush1.bf16.msra.mxu0 %v800
        %807 = vmatprep.subr.bf16.mxu0 0
        %808 = vmatpush1.bf16.msra.mxu0 0
        %809 = vmatprep.subr.bf16.mxu0 0
        %810 = vmatpush1.bf16.msra.mxu0 0
        %811 = vmatprep.subr.bf16.mxu0 0
        %812 = vmatpush1.bf16.msra.mxu0 0
        %813 = vmatprep.subr.bf16.mxu0 0
        %814 = vmatpush1.bf16.msra.mxu0 0
        %815 = vmatprep.subr.bf16.mxu0 0
        %816 = vmatpush1.bf16.msra.mxu0 0
        %817 = vmatprep.subr.bf16.mxu0 0
        %818 = vmatpush1.bf16.msra.mxu0 0
        %819 = vmatprep.subr.bf16.mxu0 0
        %820 = vmatpush1.bf16.msra.mxu0 0
        %821 = vmatprep.subr.bf16.mxu0 0
        %822 = vmatpush1.bf16.msra.mxu0 0
        %823 = vmatprep.subr.bf16.mxu0 0
        %824 = vmatpush1.bf16.msra.mxu0 0
        %825 = vmatprep.subr.bf16.mxu0 0
        %826 = vmatpush1.bf16.msra.mxu0 0
        %827 = vmatprep.subr.bf16.mxu0 0
        %828 = vmatpush1.bf16.msra.mxu0 0
        %829 = vmatprep.subr.bf16.mxu0 0
        %830 = vmatpush1.bf16.msra.mxu0 0
        %831 = vmatprep.subr.bf16.mxu0 0
        %832 = vmatpush1.bf16.msra.mxu0 0
        %833 = vmatprep.subr.bf16.mxu0 0
        %834 = vmatpush1.bf16.msra.mxu0 0
        %835 = vmatprep.mubr.bf16.mxu0 0
        %836 = vmatmul.mubr.bf16.gmra.mrb[0].mxu0 %v519
        %v837 = vpop.f32.mrb[0].mxu0
        %v838 = vadd.f32 0.0, %v837
        %v839 = vpop.f32.mrb[0].mxu0
        %v840 = vpop.f32.mrb[0].mxu0
        %v841 = vpop.f32.mrb[0].mxu0
        %842 = vdwg.mxu0
        %v843 = vmul.f32 %v838, 0.35355338
        %s844 = scalar_lea.vmem %s4, 16
        %v845 = vld [vmem:[%s844] sm:$0xf]
        %v846 = vld [vmem:[%s844 + $0x4] sm:$0xf]
        %v847 = vld [vmem:[%s844 + $0x8] sm:$0xf]
        %v848 = vld [vmem:[%s844 + $0xc] sm:$0xf]
        %v853 = vunpack.c.l.b16 %v845
        %v854 = vunpack.c.l.b16 %v846
        %v855 = vunpack.c.l.b16 %v847
        %v856 = vunpack.c.l.b16 %v848
        %v857 = vpack.c.b16 %v854, %v853
        %v858 = vpack.c.b16 %v856, %v855
        %861 = vmatprep.subr.bf16.mxu0 0
        %862 = vmatpush1.bf16.msra.mxu0 %v857
        %863 = vmatprep.subr.bf16.mxu0 0
        %864 = vmatpush1.bf16.msra.mxu0 %v858
        %865 = vmatprep.subr.bf16.mxu0 0
        %866 = vmatpush1.bf16.msra.mxu0 0
        %867 = vmatprep.subr.bf16.mxu0 0
        %868 = vmatpush1.bf16.msra.mxu0 0
        %869 = vmatprep.subr.bf16.mxu0 0
        %870 = vmatpush1.bf16.msra.mxu0 0
        %871 = vmatprep.subr.bf16.mxu0 0
        %872 = vmatpush1.bf16.msra.mxu0 0
        %873 = vmatprep.subr.bf16.mxu0 0
        %874 = vmatpush1.bf16.msra.mxu0 0
        %875 = vmatprep.subr.bf16.mxu0 0
        %876 = vmatpush1.bf16.msra.mxu0 0
        %877 = vmatprep.subr.bf16.mxu0 0
        %878 = vmatpush1.bf16.msra.mxu0 0
        %879 = vmatprep.subr.bf16.mxu0 0
        %880 = vmatpush1.bf16.msra.mxu0 0
        %881 = vmatprep.subr.bf16.mxu0 0
        %882 = vmatpush1.bf16.msra.mxu0 0
        %883 = vmatprep.subr.bf16.mxu0 0
        %884 = vmatpush1.bf16.msra.mxu0 0
        %885 = vmatprep.subr.bf16.mxu0 0
        %886 = vmatpush1.bf16.msra.mxu0 0
        %887 = vmatprep.subr.bf16.mxu0 0
        %888 = vmatpush1.bf16.msra.mxu0 0
        %889 = vmatprep.subr.bf16.mxu0 0
        %890 = vmatpush1.bf16.msra.mxu0 0
        %891 = vmatprep.subr.bf16.mxu0 0
        %892 = vmatpush1.bf16.msra.mxu0 0
        %893 = vmatprep.mubr.bf16.mxu0 0
        %894 = vmatmul.mubr.bf16.gmra.mrb[0].mxu0 %v519
        %v895 = vpop.f32.mrb[0].mxu0
        %v896 = vadd.f32 0.0, %v895
        %v897 = vpop.f32.mrb[0].mxu0
        %v898 = vpop.f32.mrb[0].mxu0
        %v899 = vpop.f32.mrb[0].mxu0
        %900 = vdwg.mxu0
        %s901 = scalar_lea.vmem %s5, 16
        %v902 = vld [vmem:[%s901] sm:$0xf]
        %v903 = vld [vmem:[%s901 + $0x4] sm:$0xf]
        %v904 = vld [vmem:[%s901 + $0x8] sm:$0xf]
        %v905 = vld [vmem:[%s901 + $0xc] sm:$0xf]
        %v910 = vunpack.c.l.b16 %v902
        %v911 = vunpack.c.l.b16 %v903
        %v912 = vunpack.c.l.b16 %v904
        %v913 = vunpack.c.l.b16 %v905
        %v914 = vpack.c.b16 %v911, %v910
        %v915 = vpack.c.b16 %v913, %v912
        %918 = vmatprep.subr.bf16.mxu0 0
        %919 = vmatpush1.bf16.msra.mxu0 %v914
        %920 = vmatprep.subr.bf16.mxu0 0
        %921 = vmatpush1.bf16.msra.mxu0 %v915
        %922 = vmatprep.subr.bf16.mxu0 0
        %923 = vmatpush1.bf16.msra.mxu0 0
        %924 = vmatprep.subr.bf16.mxu0 0
        %925 = vmatpush1.bf16.msra.mxu0 0
        %926 = vmatprep.subr.bf16.mxu0 0
        %927 = vmatpush1.bf16.msra.mxu0 0
        %928 = vmatprep.subr.bf16.mxu0 0
        %929 = vmatpush1.bf16.msra.mxu0 0
        %930 = vmatprep.subr.bf16.mxu0 0
        %931 = vmatpush1.bf16.msra.mxu0 0
        %932 = vmatprep.subr.bf16.mxu0 0
        %933 = vmatpush1.bf16.msra.mxu0 0
        %934 = vmatprep.subr.bf16.mxu0 0
        %935 = vmatpush1.bf16.msra.mxu0 0
        %936 = vmatprep.subr.bf16.mxu0 0
        %937 = vmatpush1.bf16.msra.mxu0 0
        %938 = vmatprep.subr.bf16.mxu0 0
        %939 = vmatpush1.bf16.msra.mxu0 0
        %940 = vmatprep.subr.bf16.mxu0 0
        %941 = vmatpush1.bf16.msra.mxu0 0
        %942 = vmatprep.subr.bf16.mxu0 0
        %943 = vmatpush1.bf16.msra.mxu0 0
        %944 = vmatprep.subr.bf16.mxu0 0
        %945 = vmatpush1.bf16.msra.mxu0 0
        %946 = vmatprep.subr.bf16.mxu0 0
        %947 = vmatpush1.bf16.msra.mxu0 0
        %948 = vmatprep.subr.bf16.mxu0 0
        %949 = vmatpush1.bf16.msra.mxu0 0
        %950 = vmatprep.mubr.bf16.mxu0 0
        %951 = vmatmul.mubr.bf16.gmra.mrb[0].mxu0 %v519
        %v952 = vpop.f32.mrb[0].mxu0
        %v953 = vadd.f32 0.0, %v952
        %v954 = vpop.f32.mrb[0].mxu0
        %v955 = vpop.f32.mrb[0].mxu0
        %v956 = vpop.f32.mrb[0].mxu0
        %957 = vdwg.mxu0
        %v958 = vpack.c.bf16 %v843, %v843
        %v959 = vpack.c.bf16 %v896, %v896
        %v961 = vsel %vm676, %v958, 0
        %v964 = vsel %vm676, %v959, 0
        %966 = vmatprep.subr.bf16.mxu0 0
        %967 = vmatpush1.bf16.xpose.msra.mxu0 %v964
        %968 = vmatprep.subr.bf16.mxu0 0
        %969 = vmatpush1.bf16.xpose.msra.mxu0 0
        %970 = vmatprep.subr.bf16.mxu0 0
        %971 = vmatpush1.bf16.xpose.msra.mxu0 0
        %972 = vmatprep.subr.bf16.mxu0 0
        %973 = vmatpush1.bf16.xpose.msra.mxu0 0
        %974 = vmatprep.subr.bf16.mxu0 0
        %975 = vmatpush1.bf16.xpose.msra.mxu0 0
        %976 = vmatprep.subr.bf16.mxu0 0
        %977 = vmatpush1.bf16.xpose.msra.mxu0 0
        %978 = vmatprep.subr.bf16.mxu0 0
        %979 = vmatpush1.bf16.xpose.msra.mxu0 0
        %980 = vmatprep.subr.bf16.mxu0 0
        %981 = vmatpush1.bf16.xpose.msra.mxu0 0
        %982 = vmatprep.subr.bf16.mxu0 0
        %983 = vmatpush1.bf16.xpose.msra.mxu0 0
        %984 = vmatprep.subr.bf16.mxu0 0
        %985 = vmatpush1.bf16.xpose.msra.mxu0 0
        %986 = vmatprep.subr.bf16.mxu0 0
        %987 = vmatpush1.bf16.xpose.msra.mxu0 0
        %988 = vmatprep.subr.bf16.mxu0 0
        %989 = vmatpush1.bf16.xpose.msra.mxu0 0
        %990 = vmatprep.subr.bf16.mxu0 0
        %991 = vmatpush1.bf16.xpose.msra.mxu0 0
        %992 = vmatprep.subr.bf16.mxu0 0
        %993 = vmatpush1.bf16.xpose.msra.mxu0 0
        %994 = vmatprep.subr.bf16.mxu0 0
        %995 = vmatpush1.bf16.xpose.msra.mxu0 0
        %996 = vmatprep.subr.bf16.mxu0 0
        %997 = vmatpush1.bf16.xpose.msra.mxu0 0
        %998 = vmatprep.mubr.bf16.mxu0 0
        %999 = vmatmul.mubr.bf16.gmra.mrb[0].mxu0 %v961
        %v1000 = vpop.f32.mrb[0].mxu0
        %v1001 = vadd.f32 0.0, %v1000
        %v1002 = vpop.f32.mrb[0].mxu0
        %v1003 = vpop.f32.mrb[0].mxu0
        %v1004 = vpop.f32.mrb[0].mxu0
        %1005 = vdwg.mxu0
        %v1006 = vsel %vm501, %v1001, -inf
        %v1007 = vsel %vm676, %v1006, -inf
        %1008 = vmax.xlane.f32.xlu0 %v1007
        %v1009 = vpop.xlane.xlu0 %1008
        %v1010 = vsub.f32 %v1006, %v1009
        %v1011 = vmul.f32 %v1010, 1.442695
        %v1012 = vpow.pop %v1011
        %v1013 = vsel %vm676, %v1012, 0.0
        %1014 = vadd.xlane.f32.xlu0 %v1013
        %v1015 = vpop.xlane.xlu0 %1014
        %v1016 = vrcp.pop %v1015
        %v1017 = vmul.f32 %v1012, %v1016
        %v1018 = vpack.c.bf16 %v1017, %v1017
        %v1019 = vpack.c.bf16 %v953, %v953
        %v1021 = vsel %vm676, %v1018, 0
        %v1024 = vsel %vm740, %v1019, 0
        %1026 = vmatprep.subr.bf16.mxu0 0
        %1027 = vmatpush1.bf16.msra.mxu0 %v1024
        %1028 = vmatprep.subr.bf16.mxu0 0
        %1029 = vmatpush1.bf16.msra.mxu0 0
        %1030 = vmatprep.subr.bf16.mxu0 0
        %1031 = vmatpush1.bf16.msra.mxu0 0
        %1032 = vmatprep.subr.bf16.mxu0 0
        %1033 = vmatpush1.bf16.msra.mxu0 0
        %1034 = vmatprep.subr.bf16.mxu0 0
        %1035 = vmatpush1.bf16.msra.mxu0 0
        %1036 = vmatprep.subr.bf16.mxu0 0
        %1037 = vmatpush1.bf16.msra.mxu0 0
        %1038 = vmatprep.subr.bf16.mxu0 0
        %1039 = vmatpush1.bf16.msra.mxu0 0
        %1040 = vmatprep.subr.bf16.mxu0 0
        %1041 = vmatpush1.bf16.msra.mxu0 0
        %1042 = vmatprep.subr.bf16.mxu0 0
        %1043 = vmatpush1.bf16.msra.mxu0 0
        %1044 = vmatprep.subr.bf16.mxu0 0
        %1045 = vmatpush1.bf16.msra.mxu0 0
        %1046 = vmatprep.subr.bf16.mxu0 0
        %1047 = vmatpush1.bf16.msra.mxu0 0
        %1048 = vmatprep.subr.bf16.mxu0 0
        %1049 = vmatpush1.bf16.msra.mxu0 0
        %1050 = vmatprep.subr.bf16.mxu0 0
        %1051 = vmatpush1.bf16.msra.mxu0 0
        %1052 = vmatprep.subr.bf16.mxu0 0
        %1053 = vmatpush1.bf16.msra.mxu0 0
        %1054 = vmatprep.subr.bf16.mxu0 0
        %1055 = vmatpush1.bf16.msra.mxu0 0
        %1056 = vmatprep.subr.bf16.mxu0 0
        %1057 = vmatpush1.bf16.msra.mxu0 0
        %1058 = vmatprep.mubr.bf16.mxu0 0
        %1059 = vmatmul.mubr.bf16.gmra.mrb[0].mxu0 %v1021
        %v1060 = vpop.f32.mrb[0].mxu0
        %v1061 = vadd.f32 0.0, %v1060
        %v1062 = vpop.f32.mrb[0].mxu0
        %v1063 = vpop.f32.mrb[0].mxu0
        %v1064 = vpop.f32.mrb[0].mxu0
        %1065 = vdwg.mxu0
        %v1066 = vpack.c.bf16 %v1061, %v1061
        %s1067 = scalar_lea.vmem %s6, 4
        %v1068 = vld [vmem:[%s1067] sm:$0xf]
        %v1070 = vsel %vm676, %v1066, 0
        %v1073 = vsel %vm740, %v1068, 0
        %1075 = vmatprep.subr.bf16.mxu0 0
        %1076 = vmatpush1.bf16.msra.mxu0 %v1073
        %1077 = vmatprep.subr.bf16.mxu0 0
        %1078 = vmatpush1.bf16.msra.mxu0 0
        %1079 = vmatprep.subr.bf16.mxu0 0
        %1080 = vmatpush1.bf16.msra.mxu0 0
        %1081 = vmatprep.subr.bf16.mxu0 0
        %1082 = vmatpush1.bf16.msra.mxu0 0
        %1083 = vmatprep.subr.bf16.mxu0 0
        %1084 = vmatpush1.bf16.msra.mxu0 0
        %1085 = vmatprep.subr.bf16.mxu0 0
        %1086 = vmatpush1.bf16.msra.mxu0 0
        %1087 = vmatprep.subr.bf16.mxu0 0
        %1088 = vmatpush1.bf16.msra.mxu0 0
        %1089 = vmatprep.subr.bf16.mxu0 0
        %1090 = vmatpush1.bf16.msra.mxu0 0
        %1091 = vmatprep.subr.bf16.mxu0 0
        %1092 = vmatpush1.bf16.msra.mxu0 0
        %1093 = vmatprep.subr.bf16.mxu0 0
        %1094 = vmatpush1.bf16.msra.mxu0 0
        %1095 = vmatprep.subr.bf16.mxu0 0
        %1096 = vmatpush1.bf16.msra.mxu0 0
        %1097 = vmatprep.subr.bf16.mxu0 0
        %1098 = vmatpush1.bf16.msra.mxu0 0
        %1099 = vmatprep.subr.bf16.mxu0 0
        %1100 = vmatpush1.bf16.msra.mxu0 0
        %1101 = vmatprep.subr.bf16.mxu0 0
        %1102 = vmatpush1.bf16.msra.mxu0 0
        %1103 = vmatprep.subr.bf16.mxu0 0
        %1104 = vmatpush1.bf16.msra.mxu0 0
        %1105 = vmatprep.subr.bf16.mxu0 0
        %1106 = vmatpush1.bf16.msra.mxu0 0
        %1107 = vmatprep.mubr.bf16.mxu0 0
        %1108 = vmatmul.mubr.bf16.gmra.mrb[0].mxu0 %v1070
        %v1109 = vpop.f32.mrb[0].mxu0
        %v1110 = vadd.f32 0.0, %v1109
        %v1111 = vpop.f32.mrb[0].mxu0
        %v1112 = vpop.f32.mrb[0].mxu0
        %v1113 = vpop.f32.mrb[0].mxu0
        %1114 = vdwg.mxu0
        %v1116 = vsel %vm676, %v784, 0
        %v1119 = vsel %vm740, %v785, 0
        %1121 = vmatprep.subr.bf16.mxu0 0
        %1122 = vmatpush1.bf16.msra.mxu0 %v1119
        %1123 = vmatprep.subr.bf16.mxu0 0
        %1124 = vmatpush1.bf16.msra.mxu0 0
        %1125 = vmatprep.subr.bf16.mxu0 0
        %1126 = vmatpush1.bf16.msra.mxu0 0
        %1127 = vmatprep.subr.bf16.mxu0 0
        %1128 = vmatpush1.bf16.msra.mxu0 0
        %1129 = vmatprep.subr.bf16.mxu0 0
        %1130 = vmatpush1.bf16.msra.mxu0 0
        %1131 = vmatprep.subr.bf16.mxu0 0
        %1132 = vmatpush1.bf16.msra.mxu0 0
        %1133 = vmatprep.subr.bf16.mxu0 0
        %1134 = vmatpush1.bf16.msra.mxu0 0
        %1135 = vmatprep.subr.bf16.mxu0 0
        %1136 = vmatpush1.bf16.msra.mxu0 0
        %1137 = vmatprep.subr.bf16.mxu0 0
        %1138 = vmatpush1.bf16.msra.mxu0 0
        %1139 = vmatprep.subr.bf16.mxu0 0
        %1140 = vmatpush1.bf16.msra.mxu0 0
        %1141 = vmatprep.subr.bf16.mxu0 0
        %1142 = vmatpush1.bf16.msra.mxu0 0
        %1143 = vmatprep.subr.bf16.mxu0 0
        %1144 = vmatpush1.bf16.msra.mxu0 0
        %1145 = vmatprep.subr.bf16.mxu0 0
        %1146 = vmatpush1.bf16.msra.mxu0 0
        %1147 = vmatprep.subr.bf16.mxu0 0
        %1148 = vmatpush1.bf16.msra.mxu0 0
        %1149 = vmatprep.subr.bf16.mxu0 0
        %1150 = vmatpush1.bf16.msra.mxu0 0
        %1151 = vmatprep.subr.bf16.mxu0 0
        %1152 = vmatpush1.bf16.msra.mxu0 0
        %1153 = vmatprep.mubr.bf16.mxu0 0
        %1154 = vmatmul.mubr.bf16.gmra.mrb[0].mxu0 %v1116
        %v1155 = vpop.f32.mrb[0].mxu0
        %v1156 = vadd.f32 %v1110, %v1155
        %v1157 = vpop.f32.mrb[0].mxu0
        %v1158 = vpop.f32.mrb[0].mxu0
        %v1159 = vpop.f32.mrb[0].mxu0
        %1160 = vdwg.mxu0
        %s1161 = scalar_lea.vmem %s3, 32
        %v1162 = vld [vmem:[%s1161] sm:$0xf]
        %v1163 = vld [vmem:[%s1161 + $0x4] sm:$0xf]
        %v1164 = vld [vmem:[%s1161 + $0x8] sm:$0xf]
        %v1165 = vld [vmem:[%s1161 + $0xc] sm:$0xf]
        %v1170 = vunpack.c.l.b16 %v1162
        %v1171 = vunpack.c.l.b16 %v1163
        %v1172 = vunpack.c.l.b16 %v1164
        %v1173 = vunpack.c.l.b16 %v1165
        %v1174 = vpack.c.b16 %v1171, %v1170
        %v1175 = vpack.c.b16 %v1173, %v1172
        %1178 = vmatprep.subr.bf16.mxu0 0
        %1179 = vmatpush1.bf16.msra.mxu0 %v1174
        %1180 = vmatprep.subr.bf16.mxu0 0
        %1181 = vmatpush1.bf16.msra.mxu0 %v1175
        %1182 = vmatprep.subr.bf16.mxu0 0
        %1183 = vmatpush1.bf16.msra.mxu0 0
        %1184 = vmatprep.subr.bf16.mxu0 0
        %1185 = vmatpush1.bf16.msra.mxu0 0
        %1186 = vmatprep.subr.bf16.mxu0 0
        %1187 = vmatpush1.bf16.msra.mxu0 0
        %1188 = vmatprep.subr.bf16.mxu0 0
        %1189 = vmatpush1.bf16.msra.mxu0 0
        %1190 = vmatprep.subr.bf16.mxu0 0
        %1191 = vmatpush1.bf16.msra.mxu0 0
        %1192 = vmatprep.subr.bf16.mxu0 0
        %1193 = vmatpush1.bf16.msra.mxu0 0
        %1194 = vmatprep.subr.bf16.mxu0 0
        %1195 = vmatpush1.bf16.msra.mxu0 0
        %1196 = vmatprep.subr.bf16.mxu0 0
        %1197 = vmatpush1.bf16.msra.mxu0 0
        %1198 = vmatprep.subr.bf16.mxu0 0
        %1199 = vmatpush1.bf16.msra.mxu0 0
        %1200 = vmatprep.subr.bf16.mxu0 0
        %1201 = vmatpush1.bf16.msra.mxu0 0
        %1202 = vmatprep.subr.bf16.mxu0 0
        %1203 = vmatpush1.bf16.msra.mxu0 0
        %1204 = vmatprep.subr.bf16.mxu0 0
        %1205 = vmatpush1.bf16.msra.mxu0 0
        %1206 = vmatprep.subr.bf16.mxu0 0
        %1207 = vmatpush1.bf16.msra.mxu0 0
        %1208 = vmatprep.subr.bf16.mxu0 0
        %1209 = vmatpush1.bf16.msra.mxu0 0
        %1210 = vmatprep.mubr.bf16.mxu0 0
        %1211 = vmatmul.mubr.bf16.gmra.mrb[0].mxu0 %v519
        %v1212 = vpop.f32.mrb[0].mxu0
        %v1213 = vadd.f32 0.0, %v1212
        %v1214 = vpop.f32.mrb[0].mxu0
        %v1215 = vpop.f32.mrb[0].mxu0
        %v1216 = vpop.f32.mrb[0].mxu0
        %1217 = vdwg.mxu0
        %v1218 = vmul.f32 %v1213, 0.35355338
        %s1219 = scalar_lea.vmem %s4, 32
        %v1220 = vld [vmem:[%s1219] sm:$0xf]
        %v1221 = vld [vmem:[%s1219 + $0x4] sm:$0xf]
        %v1222 = vld [vmem:[%s1219 + $0x8] sm:$0xf]
        %v1223 = vld [vmem:[%s1219 + $0xc] sm:$0xf]
        %v1228 = vunpack.c.l.b16 %v1220
        %v1229 = vunpack.c.l.b16 %v1221
        %v1230 = vunpack.c.l.b16 %v1222
        %v1231 = vunpack.c.l.b16 %v1223
        %v1232 = vpack.c.b16 %v1229, %v1228
        %v1233 = vpack.c.b16 %v1231, %v1230
        %1236 = vmatprep.subr.bf16.mxu0 0
        %1237 = vmatpush1.bf16.msra.mxu0 %v1232
        %1238 = vmatprep.subr.bf16.mxu0 0
        %1239 = vmatpush1.bf16.msra.mxu0 %v1233
        %1240 = vmatprep.subr.bf16.mxu0 0
        %1241 = vmatpush1.bf16.msra.mxu0 0
        %1242 = vmatprep.subr.bf16.mxu0 0
        %1243 = vmatpush1.bf16.msra.mxu0 0
        %1244 = vmatprep.subr.bf16.mxu0 0
        %1245 = vmatpush1.bf16.msra.mxu0 0
        %1246 = vmatprep.subr.bf16.mxu0 0
        %1247 = vmatpush1.bf16.msra.mxu0 0
        %1248 = vmatprep.subr.bf16.mxu0 0
        %1249 = vmatpush1.bf16.msra.mxu0 0
        %1250 = vmatprep.subr.bf16.mxu0 0
        %1251 = vmatpush1.bf16.msra.mxu0 0
        %1252 = vmatprep.subr.bf16.mxu0 0
        %1253 = vmatpush1.bf16.msra.mxu0 0
        %1254 = vmatprep.subr.bf16.mxu0 0
        %1255 = vmatpush1.bf16.msra.mxu0 0
        %1256 = vmatprep.subr.bf16.mxu0 0
        %1257 = vmatpush1.bf16.msra.mxu0 0
        %1258 = vmatprep.subr.bf16.mxu0 0
        %1259 = vmatpush1.bf16.msra.mxu0 0
        %1260 = vmatprep.subr.bf16.mxu0 0
        %1261 = vmatpush1.bf16.msra.mxu0 0
        %1262 = vmatprep.subr.bf16.mxu0 0
        %1263 = vmatpush1.bf16.msra.mxu0 0
        %1264 = vmatprep.subr.bf16.mxu0 0
        %1265 = vmatpush1.bf16.msra.mxu0 0
        %1266 = vmatprep.subr.bf16.mxu0 0
        %1267 = vmatpush1.bf16.msra.mxu0 0
        %1268 = vmatprep.mubr.bf16.mxu0 0
        %1269 = vmatmul.mubr.bf16.gmra.mrb[0].mxu0 %v519
        %v1270 = vpop.f32.mrb[0].mxu0
        %v1271 = vadd.f32 0.0, %v1270
        %v1272 = vpop.f32.mrb[0].mxu0
        %v1273 = vpop.f32.mrb[0].mxu0
        %v1274 = vpop.f32.mrb[0].mxu0
        %1275 = vdwg.mxu0
        %s1276 = scalar_lea.vmem %s5, 32
        %v1277 = vld [vmem:[%s1276] sm:$0xf]
        %v1278 = vld [vmem:[%s1276 + $0x4] sm:$0xf]
        %v1279 = vld [vmem:[%s1276 + $0x8] sm:$0xf]
        %v1280 = vld [vmem:[%s1276 + $0xc] sm:$0xf]
        %v1285 = vunpack.c.l.b16 %v1277
        %v1286 = vunpack.c.l.b16 %v1278
        %v1287 = vunpack.c.l.b16 %v1279
        %v1288 = vunpack.c.l.b16 %v1280
        %v1289 = vpack.c.b16 %v1286, %v1285
        %v1290 = vpack.c.b16 %v1288, %v1287
        %1293 = vmatprep.subr.bf16.mxu0 0
        %1294 = vmatpush1.bf16.msra.mxu0 %v1289
        %1295 = vmatprep.subr.bf16.mxu0 0
        %1296 = vmatpush1.bf16.msra.mxu0 %v1290
        %1297 = vmatprep.subr.bf16.mxu0 0
        %1298 = vmatpush1.bf16.msra.mxu0 0
        %1299 = vmatprep.subr.bf16.mxu0 0
        %1300 = vmatpush1.bf16.msra.mxu0 0
        %1301 = vmatprep.subr.bf16.mxu0 0
        %1302 = vmatpush1.bf16.msra.mxu0 0
        %1303 = vmatprep.subr.bf16.mxu0 0
        %1304 = vmatpush1.bf16.msra.mxu0 0
        %1305 = vmatprep.subr.bf16.mxu0 0
        %1306 = vmatpush1.bf16.msra.mxu0 0
        %1307 = vmatprep.subr.bf16.mxu0 0
        %1308 = vmatpush1.bf16.msra.mxu0 0
        %1309 = vmatprep.subr.bf16.mxu0 0
        %1310 = vmatpush1.bf16.msra.mxu0 0
        %1311 = vmatprep.subr.bf16.mxu0 0
        %1312 = vmatpush1.bf16.msra.mxu0 0
        %1313 = vmatprep.subr.bf16.mxu0 0
        %1314 = vmatpush1.bf16.msra.mxu0 0
        %1315 = vmatprep.subr.bf16.mxu0 0
        %1316 = vmatpush1.bf16.msra.mxu0 0
        %1317 = vmatprep.subr.bf16.mxu0 0
        %1318 = vmatpush1.bf16.msra.mxu0 0
        %1319 = vmatprep.subr.bf16.mxu0 0
        %1320 = vmatpush1.bf16.msra.mxu0 0
        %1321 = vmatprep.subr.bf16.mxu0 0
        %1322 = vmatpush1.bf16.msra.mxu0 0
        %1323 = vmatprep.subr.bf16.mxu0 0
        %1324 = vmatpush1.bf16.msra.mxu0 0
        %1325 = vmatprep.mubr.bf16.mxu0 0
        %1326 = vmatmul.mubr.bf16.gmra.mrb[0].mxu0 %v519
        %v1327 = vpop.f32.mrb[0].mxu0
        %v1328 = vadd.f32 0.0, %v1327
        %v1329 = vpop.f32.mrb[0].mxu0
        %v1330 = vpop.f32.mrb[0].mxu0
        %v1331 = vpop.f32.mrb[0].mxu0
        %1332 = vdwg.mxu0
        %v1333 = vpack.c.bf16 %v1218, %v1218
        %v1334 = vpack.c.bf16 %v1271, %v1271
        %v1336 = vsel %vm676, %v1333, 0
        %v1339 = vsel %vm676, %v1334, 0
        %1341 = vmatprep.subr.bf16.mxu0 0
        %1342 = vmatpush1.bf16.xpose.msra.mxu0 %v1339
        %1343 = vmatprep.subr.bf16.mxu0 0
        %1344 = vmatpush1.bf16.xpose.msra.mxu0 0
        %1345 = vmatprep.subr.bf16.mxu0 0
        %1346 = vmatpush1.bf16.xpose.msra.mxu0 0
        %1347 = vmatprep.subr.bf16.mxu0 0
        %1348 = vmatpush1.bf16.xpose.msra.mxu0 0
        %1349 = vmatprep.subr.bf16.mxu0 0
        %1350 = vmatpush1.bf16.xpose.msra.mxu0 0
        %1351 = vmatprep.subr.bf16.mxu0 0
        %1352 = vmatpush1.bf16.xpose.msra.mxu0 0
        %1353 = vmatprep.subr.bf16.mxu0 0
        %1354 = vmatpush1.bf16.xpose.msra.mxu0 0
        %1355 = vmatprep.subr.bf16.mxu0 0
        %1356 = vmatpush1.bf16.xpose.msra.mxu0 0
        %1357 = vmatprep.subr.bf16.mxu0 0
        %1358 = vmatpush1.bf16.xpose.msra.mxu0 0
        %1359 = vmatprep.subr.bf16.mxu0 0
        %1360 = vmatpush1.bf16.xpose.msra.mxu0 0
        %1361 = vmatprep.subr.bf16.mxu0 0
        %1362 = vmatpush1.bf16.xpose.msra.mxu0 0
        %1363 = vmatprep.subr.bf16.mxu0 0
        %1364 = vmatpush1.bf16.xpose.msra.mxu0 0
        %1365 = vmatprep.subr.bf16.mxu0 0
        %1366 = vmatpush1.bf16.xpose.msra.mxu0 0
        %1367 = vmatprep.subr.bf16.mxu0 0
        %1368 = vmatpush1.bf16.xpose.msra.mxu0 0
        %1369 = vmatprep.subr.bf16.mxu0 0
        %1370 = vmatpush1.bf16.xpose.msra.mxu0 0
        %1371 = vmatprep.subr.bf16.mxu0 0
        %1372 = vmatpush1.bf16.xpose.msra.mxu0 0
        %1373 = vmatprep.mubr.bf16.mxu0 0
        %1374 = vmatmul.mubr.bf16.gmra.mrb[0].mxu0 %v1336
        %v1375 = vpop.f32.mrb[0].mxu0
        %v1376 = vadd.f32 0.0, %v1375
        %v1377 = vpop.f32.mrb[0].mxu0
        %v1378 = vpop.f32.mrb[0].mxu0
        %v1379 = vpop.f32.mrb[0].mxu0
        %1380 = vdwg.mxu0
        %v1381 = vsel %vm501, %v1376, -inf
        %v1382 = vsel %vm676, %v1381, -inf
        %1383 = vmax.xlane.f32.xlu0 %v1382
        %v1384 = vpop.xlane.xlu0 %1383
        %v1385 = vsub.f32 %v1381, %v1384
        %v1386 = vmul.f32 %v1385, 1.442695
        %v1387 = vpow.pop %v1386
        %v1388 = vsel %vm676, %v1387, 0.0
        %1389 = vadd.xlane.f32.xlu0 %v1388
        %v1390 = vpop.xlane.xlu0 %1389
        %v1391 = vrcp.pop %v1390
        %v1392 = vmul.f32 %v1387, %v1391
        %v1393 = vpack.c.bf16 %v1392, %v1392
        %v1394 = vpack.c.bf16 %v1328, %v1328
        %v1396 = vsel %vm676, %v1393, 0
        %v1399 = vsel %vm740, %v1394, 0
        %1401 = vmatprep.subr.bf16.mxu0 0
        %1402 = vmatpush1.bf16.msra.mxu0 %v1399
        %1403 = vmatprep.subr.bf16.mxu0 0
        %1404 = vmatpush1.bf16.msra.mxu0 0
        %1405 = vmatprep.subr.bf16.mxu0 0
        %1406 = vmatpush1.bf16.msra.mxu0 0
        %1407 = vmatprep.subr.bf16.mxu0 0
        %1408 = vmatpush1.bf16.msra.mxu0 0
        %1409 = vmatprep.subr.bf16.mxu0 0
        %1410 = vmatpush1.bf16.msra.mxu0 0
        %1411 = vmatprep.subr.bf16.mxu0 0
        %1412 = vmatpush1.bf16.msra.mxu0 0
        %1413 = vmatprep.subr.bf16.mxu0 0
        %1414 = vmatpush1.bf16.msra.mxu0 0
        %1415 = vmatprep.subr.bf16.mxu0 0
        %1416 = vmatpush1.bf16.msra.mxu0 0
        %1417 = vmatprep.subr.bf16.mxu0 0
        %1418 = vmatpush1.bf16.msra.mxu0 0
        %1419 = vmatprep.subr.bf16.mxu0 0
        %1420 = vmatpush1.bf16.msra.mxu0 0
        %1421 = vmatprep.subr.bf16.mxu0 0
        %1422 = vmatpush1.bf16.msra.mxu0 0
        %1423 = vmatprep.subr.bf16.mxu0 0
        %1424 = vmatpush1.bf16.msra.mxu0 0
        %1425 = vmatprep.subr.bf16.mxu0 0
        %1426 = vmatpush1.bf16.msra.mxu0 0
        %1427 = vmatprep.subr.bf16.mxu0 0
        %1428 = vmatpush1.bf16.msra.mxu0 0
        %1429 = vmatprep.subr.bf16.mxu0 0
        %1430 = vmatpush1.bf16.msra.mxu0 0
        %1431 = vmatprep.subr.bf16.mxu0 0
        %1432 = vmatpush1.bf16.msra.mxu0 0
        %1433 = vmatprep.mubr.bf16.mxu0 0
        %1434 = vmatmul.mubr.bf16.gmra.mrb[0].mxu0 %v1396
        %v1435 = vpop.f32.mrb[0].mxu0
        %v1436 = vadd.f32 0.0, %v1435
        %v1437 = vpop.f32.mrb[0].mxu0
        %v1438 = vpop.f32.mrb[0].mxu0
        %v1439 = vpop.f32.mrb[0].mxu0
        %1440 = vdwg.mxu0
        %v1441 = vpack.c.bf16 %v1436, %v1436
        %s1442 = scalar_lea.vmem %s6, 8
        %v1443 = vld [vmem:[%s1442] sm:$0xf]
        %v1445 = vsel %vm676, %v1441, 0
        %v1448 = vsel %vm740, %v1443, 0
        %1450 = vmatprep.subr.bf16.mxu0 0
        %1451 = vmatpush1.bf16.msra.mxu0 %v1448
        %1452 = vmatprep.subr.bf16.mxu0 0
        %1453 = vmatpush1.bf16.msra.mxu0 0
        %1454 = vmatprep.subr.bf16.mxu0 0
        %1455 = vmatpush1.bf16.msra.mxu0 0
        %1456 = vmatprep.subr.bf16.mxu0 0
        %1457 = vmatpush1.bf16.msra.mxu0 0
        %1458 = vmatprep.subr.bf16.mxu0 0
        %1459 = vmatpush1.bf16.msra.mxu0 0
        %1460 = vmatprep.subr.bf16.mxu0 0
        %1461 = vmatpush1.bf16.msra.mxu0 0
        %1462 = vmatprep.subr.bf16.mxu0 0
        %1463 = vmatpush1.bf16.msra.mxu0 0
        %1464 = vmatprep.subr.bf16.mxu0 0
        %1465 = vmatpush1.bf16.msra.mxu0 0
        %1466 = vmatprep.subr.bf16.mxu0 0
        %1467 = vmatpush1.bf16.msra.mxu0 0
        %1468 = vmatprep.subr.bf16.mxu0 0
        %1469 = vmatpush1.bf16.msra.mxu0 0
        %1470 = vmatprep.subr.bf16.mxu0 0
        %1471 = vmatpush1.bf16.msra.mxu0 0
        %1472 = vmatprep.subr.bf16.mxu0 0
        %1473 = vmatpush1.bf16.msra.mxu0 0
        %1474 = vmatprep.subr.bf16.mxu0 0
        %1475 = vmatpush1.bf16.msra.mxu0 0
        %1476 = vmatprep.subr.bf16.mxu0 0
        %1477 = vmatpush1.bf16.msra.mxu0 0
        %1478 = vmatprep.subr.bf16.mxu0 0
        %1479 = vmatpush1.bf16.msra.mxu0 0
        %1480 = vmatprep.subr.bf16.mxu0 0
        %1481 = vmatpush1.bf16.msra.mxu0 0
        %1482 = vmatprep.mubr.bf16.mxu0 0
        %1483 = vmatmul.mubr.bf16.gmra.mrb[0].mxu0 %v1445
        %v1484 = vpop.f32.mrb[0].mxu0
        %v1485 = vadd.f32 0.0, %v1484
        %v1486 = vpop.f32.mrb[0].mxu0
        %v1487 = vpop.f32.mrb[0].mxu0
        %v1488 = vpop.f32.mrb[0].mxu0
        %1489 = vdwg.mxu0
        %v1490 = vadd.f32 %v1156, %v1485
        %s1491 = scalar_lea.vmem %s3, 48
        %v1492 = vld [vmem:[%s1491] sm:$0xf]
        %v1493 = vld [vmem:[%s1491 + $0x4] sm:$0xf]
        %v1494 = vld [vmem:[%s1491 + $0x8] sm:$0xf]
        %v1495 = vld [vmem:[%s1491 + $0xc] sm:$0xf]
        %v1500 = vunpack.c.l.b16 %v1492
        %v1501 = vunpack.c.l.b16 %v1493
        %v1502 = vunpack.c.l.b16 %v1494
        %v1503 = vunpack.c.l.b16 %v1495
        %v1504 = vpack.c.b16 %v1501, %v1500
        %v1505 = vpack.c.b16 %v1503, %v1502
        %1508 = vmatprep.subr.bf16.mxu0 0
        %1509 = vmatpush1.bf16.msra.mxu0 %v1504
        %1510 = vmatprep.subr.bf16.mxu0 0
        %1511 = vmatpush1.bf16.msra.mxu0 %v1505
        %1512 = vmatprep.subr.bf16.mxu0 0
        %1513 = vmatpush1.bf16.msra.mxu0 0
        %1514 = vmatprep.subr.bf16.mxu0 0
        %1515 = vmatpush1.bf16.msra.mxu0 0
        %1516 = vmatprep.subr.bf16.mxu0 0
        %1517 = vmatpush1.bf16.msra.mxu0 0
        %1518 = vmatprep.subr.bf16.mxu0 0
        %1519 = vmatpush1.bf16.msra.mxu0 0
        %1520 = vmatprep.subr.bf16.mxu0 0
        %1521 = vmatpush1.bf16.msra.mxu0 0
        %1522 = vmatprep.subr.bf16.mxu0 0
        %1523 = vmatpush1.bf16.msra.mxu0 0
        %1524 = vmatprep.subr.bf16.mxu0 0
        %1525 = vmatpush1.bf16.msra.mxu0 0
        %1526 = vmatprep.subr.bf16.mxu0 0
        %1527 = vmatpush1.bf16.msra.mxu0 0
        %1528 = vmatprep.subr.bf16.mxu0 0
        %1529 = vmatpush1.bf16.msra.mxu0 0
        %1530 = vmatprep.subr.bf16.mxu0 0
        %1531 = vmatpush1.bf16.msra.mxu0 0
        %1532 = vmatprep.subr.bf16.mxu0 0
        %1533 = vmatpush1.bf16.msra.mxu0 0
        %1534 = vmatprep.subr.bf16.mxu0 0
        %1535 = vmatpush1.bf16.msra.mxu0 0
        %1536 = vmatprep.subr.bf16.mxu0 0
        %1537 = vmatpush1.bf16.msra.mxu0 0
        %1538 = vmatprep.subr.bf16.mxu0 0
        %1539 = vmatpush1.bf16.msra.mxu0 0
        %1540 = vmatprep.mubr.bf16.mxu0 0
        %1541 = vmatmul.mubr.bf16.gmra.mrb[0].mxu0 %v519
        %v1542 = vpop.f32.mrb[0].mxu0
        %v1543 = vadd.f32 0.0, %v1542
        %v1544 = vpop.f32.mrb[0].mxu0
        %v1545 = vpop.f32.mrb[0].mxu0
        %v1546 = vpop.f32.mrb[0].mxu0
        %1547 = vdwg.mxu0
        %v1548 = vmul.f32 %v1543, 0.35355338
        %s1549 = scalar_lea.vmem %s4, 48
        %v1550 = vld [vmem:[%s1549] sm:$0xf]
        %v1551 = vld [vmem:[%s1549 + $0x4] sm:$0xf]
        %v1552 = vld [vmem:[%s1549 + $0x8] sm:$0xf]
        %v1553 = vld [vmem:[%s1549 + $0xc] sm:$0xf]
        %v1558 = vunpack.c.l.b16 %v1550
        %v1559 = vunpack.c.l.b16 %v1551
        %v1560 = vunpack.c.l.b16 %v1552
        %v1561 = vunpack.c.l.b16 %v1553
        %v1562 = vpack.c.b16 %v1559, %v1558
        %v1563 = vpack.c.b16 %v1561, %v1560
        %1566 = vmatprep.subr.bf16.mxu0 0
        %1567 = vmatpush1.bf16.msra.mxu0 %v1562
        %1568 = vmatprep.subr.bf16.mxu0 0
        %1569 = vmatpush1.bf16.msra.mxu0 %v1563
        %1570 = vmatprep.subr.bf16.mxu0 0
        %1571 = vmatpush1.bf16.msra.mxu0 0
        %1572 = vmatprep.subr.bf16.mxu0 0
        %1573 = vmatpush1.bf16.msra.mxu0 0
        %1574 = vmatprep.subr.bf16.mxu0 0
        %1575 = vmatpush1.bf16.msra.mxu0 0
        %1576 = vmatprep.subr.bf16.mxu0 0
        %1577 = vmatpush1.bf16.msra.mxu0 0
        %1578 = vmatprep.subr.bf16.mxu0 0
        %1579 = vmatpush1.bf16.msra.mxu0 0
        %1580 = vmatprep.subr.bf16.mxu0 0
        %1581 = vmatpush1.bf16.msra.mxu0 0
        %1582 = vmatprep.subr.bf16.mxu0 0
        %1583 = vmatpush1.bf16.msra.mxu0 0
        %1584 = vmatprep.subr.bf16.mxu0 0
        %1585 = vmatpush1.bf16.msra.mxu0 0
        %1586 = vmatprep.subr.bf16.mxu0 0
        %1587 = vmatpush1.bf16.msra.mxu0 0
        %1588 = vmatprep.subr.bf16.mxu0 0
        %1589 = vmatpush1.bf16.msra.mxu0 0
        %1590 = vmatprep.subr.bf16.mxu0 0
        %1591 = vmatpush1.bf16.msra.mxu0 0
        %1592 = vmatprep.subr.bf16.mxu0 0
        %1593 = vmatpush1.bf16.msra.mxu0 0
        %1594 = vmatprep.subr.bf16.mxu0 0
        %1595 = vmatpush1.bf16.msra.mxu0 0
        %1596 = vmatprep.subr.bf16.mxu0 0
        %1597 = vmatpush1.bf16.msra.mxu0 0
        %1598 = vmatprep.mubr.bf16.mxu0 0
        %1599 = vmatmul.mubr.bf16.gmra.mrb[0].mxu0 %v519
        %v1600 = vpop.f32.mrb[0].mxu0
        %v1601 = vadd.f32 0.0, %v1600
        %v1602 = vpop.f32.mrb[0].mxu0
        %v1603 = vpop.f32.mrb[0].mxu0
        %v1604 = vpop.f32.mrb[0].mxu0
        %1605 = vdwg.mxu0
        %s1606 = scalar_lea.vmem %s5, 48
        %v1607 = vld [vmem:[%s1606] sm:$0xf]
        %v1608 = vld [vmem:[%s1606 + $0x4] sm:$0xf]
        %v1609 = vld [vmem:[%s1606 + $0x8] sm:$0xf]
        %v1610 = vld [vmem:[%s1606 + $0xc] sm:$0xf]
        %v1615 = vunpack.c.l.b16 %v1607
        %v1616 = vunpack.c.l.b16 %v1608
        %v1617 = vunpack.c.l.b16 %v1609
        %v1618 = vunpack.c.l.b16 %v1610
        %v1619 = vpack.c.b16 %v1616, %v1615
        %v1620 = vpack.c.b16 %v1618, %v1617
        %1623 = vmatprep.subr.bf16.mxu0 0
        %1624 = vmatpush1.bf16.msra.mxu0 %v1619
        %1625 = vmatprep.subr.bf16.mxu0 0
        %1626 = vmatpush1.bf16.msra.mxu0 %v1620
        %1627 = vmatprep.subr.bf16.mxu0 0
        %1628 = vmatpush1.bf16.msra.mxu0 0
        %1629 = vmatprep.subr.bf16.mxu0 0
        %1630 = vmatpush1.bf16.msra.mxu0 0
        %1631 = vmatprep.subr.bf16.mxu0 0
        %1632 = vmatpush1.bf16.msra.mxu0 0
        %1633 = vmatprep.subr.bf16.mxu0 0
        %1634 = vmatpush1.bf16.msra.mxu0 0
        %1635 = vmatprep.subr.bf16.mxu0 0
        %1636 = vmatpush1.bf16.msra.mxu0 0
        %1637 = vmatprep.subr.bf16.mxu0 0
        %1638 = vmatpush1.bf16.msra.mxu0 0
        %1639 = vmatprep.subr.bf16.mxu0 0
        %1640 = vmatpush1.bf16.msra.mxu0 0
        %1641 = vmatprep.subr.bf16.mxu0 0
        %1642 = vmatpush1.bf16.msra.mxu0 0
        %1643 = vmatprep.subr.bf16.mxu0 0
        %1644 = vmatpush1.bf16.msra.mxu0 0
        %1645 = vmatprep.subr.bf16.mxu0 0
        %1646 = vmatpush1.bf16.msra.mxu0 0
        %1647 = vmatprep.subr.bf16.mxu0 0
        %1648 = vmatpush1.bf16.msra.mxu0 0
        %1649 = vmatprep.subr.bf16.mxu0 0
        %1650 = vmatpush1.bf16.msra.mxu0 0
        %1651 = vmatprep.subr.bf16.mxu0 0
        %1652 = vmatpush1.bf16.msra.mxu0 0
        %1653 = vmatprep.subr.bf16.mxu0 0
        %1654 = vmatpush1.bf16.msra.mxu0 0
        %1655 = vmatprep.mubr.bf16.mxu0 0
        %1656 = vmatmul.mubr.bf16.gmra.mrb[0].mxu0 %v519
        %v1657 = vpop.f32.mrb[0].mxu0
        %v1658 = vadd.f32 0.0, %v1657
        %v1659 = vpop.f32.mrb[0].mxu0
        %v1660 = vpop.f32.mrb[0].mxu0
        %v1661 = vpop.f32.mrb[0].mxu0
        %1662 = vdwg.mxu0
        %v1663 = vpack.c.bf16 %v1548, %v1548
        %v1664 = vpack.c.bf16 %v1601, %v1601
        %v1666 = vsel %vm676, %v1663, 0
        %v1669 = vsel %vm676, %v1664, 0
        %1671 = vmatprep.subr.bf16.mxu0 0
        %1672 = vmatpush1.bf16.xpose.msra.mxu0 %v1669
        %1673 = vmatprep.subr.bf16.mxu0 0
        %1674 = vmatpush1.bf16.xpose.msra.mxu0 0
        %1675 = vmatprep.subr.bf16.mxu0 0
        %1676 = vmatpush1.bf16.xpose.msra.mxu0 0
        %1677 = vmatprep.subr.bf16.mxu0 0
        %1678 = vmatpush1.bf16.xpose.msra.mxu0 0
        %1679 = vmatprep.subr.bf16.mxu0 0
        %1680 = vmatpush1.bf16.xpose.msra.mxu0 0
        %1681 = vmatprep.subr.bf16.mxu0 0
        %1682 = vmatpush1.bf16.xpose.msra.mxu0 0
        %1683 = vmatprep.subr.bf16.mxu0 0
        %1684 = vmatpush1.bf16.xpose.msra.mxu0 0
        %1685 = vmatprep.subr.bf16.mxu0 0
        %1686 = vmatpush1.bf16.xpose.msra.mxu0 0
        %1687 = vmatprep.subr.bf16.mxu0 0
        %1688 = vmatpush1.bf16.xpose.msra.mxu0 0
        %1689 = vmatprep.subr.bf16.mxu0 0
        %1690 = vmatpush1.bf16.xpose.msra.mxu0 0
        %1691 = vmatprep.subr.bf16.mxu0 0
        %1692 = vmatpush1.bf16.xpose.msra.mxu0 0
        %1693 = vmatprep.subr.bf16.mxu0 0
        %1694 = vmatpush1.bf16.xpose.msra.mxu0 0
        %1695 = vmatprep.subr.bf16.mxu0 0
        %1696 = vmatpush1.bf16.xpose.msra.mxu0 0
        %1697 = vmatprep.subr.bf16.mxu0 0
        %1698 = vmatpush1.bf16.xpose.msra.mxu0 0
        %1699 = vmatprep.subr.bf16.mxu0 0
        %1700 = vmatpush1.bf16.xpose.msra.mxu0 0
        %1701 = vmatprep.subr.bf16.mxu0 0
        %1702 = vmatpush1.bf16.xpose.msra.mxu0 0
        %1703 = vmatprep.mubr.bf16.mxu0 0
        %1704 = vmatmul.mubr.bf16.gmra.mrb[0].mxu0 %v1666
        %v1705 = vpop.f32.mrb[0].mxu0
        %v1706 = vadd.f32 0.0, %v1705
        %v1707 = vpop.f32.mrb[0].mxu0
        %v1708 = vpop.f32.mrb[0].mxu0
        %v1709 = vpop.f32.mrb[0].mxu0
        %1710 = vdwg.mxu0
        %v1711 = vsel %vm501, %v1706, -inf
        %v1712 = vsel %vm676, %v1711, -inf
        %1713 = vmax.xlane.f32.xlu0 %v1712
        %v1714 = vpop.xlane.xlu0 %1713
        %v1715 = vsub.f32 %v1711, %v1714
        %v1716 = vmul.f32 %v1715, 1.442695
        %v1717 = vpow.pop %v1716
        %v1718 = vsel %vm676, %v1717, 0.0
        %1719 = vadd.xlane.f32.xlu0 %v1718
        %v1720 = vpop.xlane.xlu0 %1719
        %v1721 = vrcp.pop %v1720
        %v1722 = vmul.f32 %v1717, %v1721
        %v1723 = vpack.c.bf16 %v1722, %v1722
        %v1724 = vpack.c.bf16 %v1658, %v1658
        %v1726 = vsel %vm676, %v1723, 0
        %v1729 = vsel %vm740, %v1724, 0
        %1731 = vmatprep.subr.bf16.mxu0 0
        %1732 = vmatpush1.bf16.msra.mxu0 %v1729
        %1733 = vmatprep.subr.bf16.mxu0 0
        %1734 = vmatpush1.bf16.msra.mxu0 0
        %1735 = vmatprep.subr.bf16.mxu0 0
        %1736 = vmatpush1.bf16.msra.mxu0 0
        %1737 = vmatprep.subr.bf16.mxu0 0
        %1738 = vmatpush1.bf16.msra.mxu0 0
        %1739 = vmatprep.subr.bf16.mxu0 0
        %1740 = vmatpush1.bf16.msra.mxu0 0
        %1741 = vmatprep.subr.bf16.mxu0 0
        %1742 = vmatpush1.bf16.msra.mxu0 0
        %1743 = vmatprep.subr.bf16.mxu0 0
        %1744 = vmatpush1.bf16.msra.mxu0 0
        %1745 = vmatprep.subr.bf16.mxu0 0
        %1746 = vmatpush1.bf16.msra.mxu0 0
        %1747 = vmatprep.subr.bf16.mxu0 0
        %1748 = vmatpush1.bf16.msra.mxu0 0
        %1749 = vmatprep.subr.bf16.mxu0 0
        %1750 = vmatpush1.bf16.msra.mxu0 0
        %1751 = vmatprep.subr.bf16.mxu0 0
        %1752 = vmatpush1.bf16.msra.mxu0 0
        %1753 = vmatprep.subr.bf16.mxu0 0
        %1754 = vmatpush1.bf16.msra.mxu0 0
        %1755 = vmatprep.subr.bf16.mxu0 0
        %1756 = vmatpush1.bf16.msra.mxu0 0
        %1757 = vmatprep.subr.bf16.mxu0 0
        %1758 = vmatpush1.bf16.msra.mxu0 0
        %1759 = vmatprep.subr.bf16.mxu0 0
        %1760 = vmatpush1.bf16.msra.mxu0 0
        %1761 = vmatprep.subr.bf16.mxu0 0
        %1762 = vmatpush1.bf16.msra.mxu0 0
        %1763 = vmatprep.mubr.bf16.mxu0 0
        %1764 = vmatmul.mubr.bf16.gmra.mrb[0].mxu0 %v1726
        %v1765 = vpop.f32.mrb[0].mxu0
        %v1766 = vadd.f32 0.0, %v1765
        %v1767 = vpop.f32.mrb[0].mxu0
        %v1768 = vpop.f32.mrb[0].mxu0
        %v1769 = vpop.f32.mrb[0].mxu0
        %1770 = vdwg.mxu0
        %v1771 = vpack.c.bf16 %v1766, %v1766
        %s1772 = scalar_lea.vmem %s6, 12
        %v1773 = vld [vmem:[%s1772] sm:$0xf]
        %v1775 = vsel %vm676, %v1771, 0
        %v1778 = vsel %vm740, %v1773, 0
        %1780 = vmatprep.subr.bf16.mxu0 0
        %1781 = vmatpush1.bf16.msra.mxu0 %v1778
        %1782 = vmatprep.subr.bf16.mxu0 0
        %1783 = vmatpush1.bf16.msra.mxu0 0
        %1784 = vmatprep.subr.bf16.mxu0 0
        %1785 = vmatpush1.bf16.msra.mxu0 0
        %1786 = vmatprep.subr.bf16.mxu0 0
        %1787 = vmatpush1.bf16.msra.mxu0 0
        %1788 = vmatprep.subr.bf16.mxu0 0
        %1789 = vmatpush1.bf16.msra.mxu0 0
        %1790 = vmatprep.subr.bf16.mxu0 0
        %1791 = vmatpush1.bf16.msra.mxu0 0
        %1792 = vmatprep.subr.bf16.mxu0 0
        %1793 = vmatpush1.bf16.msra.mxu0 0
        %1794 = vmatprep.subr.bf16.mxu0 0
        %1795 = vmatpush1.bf16.msra.mxu0 0
        %1796 = vmatprep.subr.bf16.mxu0 0
        %1797 = vmatpush1.bf16.msra.mxu0 0
        %1798 = vmatprep.subr.bf16.mxu0 0
        %1799 = vmatpush1.bf16.msra.mxu0 0
        %1800 = vmatprep.subr.bf16.mxu0 0
        %1801 = vmatpush1.bf16.msra.mxu0 0
        %1802 = vmatprep.subr.bf16.mxu0 0
        %1803 = vmatpush1.bf16.msra.mxu0 0
        %1804 = vmatprep.subr.bf16.mxu0 0
        %1805 = vmatpush1.bf16.msra.mxu0 0
        %1806 = vmatprep.subr.bf16.mxu0 0
        %1807 = vmatpush1.bf16.msra.mxu0 0
        %1808 = vmatprep.subr.bf16.mxu0 0
        %1809 = vmatpush1.bf16.msra.mxu0 0
        %1810 = vmatprep.subr.bf16.mxu0 0
        %1811 = vmatpush1.bf16.msra.mxu0 0
        %1812 = vmatprep.mubr.bf16.mxu0 0
        %1813 = vmatmul.mubr.bf16.gmra.mrb[0].mxu0 %v1775
        %v1814 = vpop.f32.mrb[0].mxu0
        %v1815 = vadd.f32 0.0, %v1814
        %v1816 = vpop.f32.mrb[0].mxu0
        %v1817 = vpop.f32.mrb[0].mxu0
        %v1818 = vpop.f32.mrb[0].mxu0
        %1819 = vdwg.mxu0
        %v1820 = vadd.f32 %v1490, %v1815
        %v1821 = vadd.f32 %v464, %v1820
        %v1822 = vld [vmem:[%s7] sm:$0x1]
        %v1824 = vlaneseq
        %v1825 = vshrl.u32 %v1824, 7
        %v1826 = vsub.s32 0, %v1825
        %v1827 = vrot.slane %v1822, %v1826
        %v1829 = vadd.f32 %v1821, %v1827
        %v1830 = vld [vmem:[%s8] sm:$0x1]
        %v1831 = vld [vmem:[%s9] sm:$0x1]
        %v1832 = vsel %vm467, %v1829, 0.0
        %1833 = vadd.xlane.f32.xlu0 %v1832
        %v1834 = vpop.xlane.xlu0 %1833
        %v1835 = vmul.f32 %v1834, %v471
        %v1836 = vsub.f32 %v1829, %v1835
        %v1837 = vmul.f32 %v1836, %v1836
        %v1838 = vsel %vm467, %v1837, 0.0
        %1839 = vadd.xlane.f32.xlu0 %v1838
        %v1840 = vpop.xlane.xlu0 %1839
        %v1841 = vmul.f32 %v1840, %v471
        %v1843 = vlaneseq
        %v1844 = vshrl.u32 %v1843, 7
        %v1845 = vsub.s32 0, %v1844
        %v1846 = vrot.slane %v1830, %v1845
        %v1848 = vmul.f32 %v1846, %v1836
        %v1849 = vadd.f32 %v1841, 1e-05
        %v1850 = vrsqrt.pop %v1849
        %v1851 = vmul.f32 %v1848, %v1850
        %v1853 = vlaneseq
        %v1854 = vshrl.u32 %v1853, 7
        %v1855 = vsub.s32 0, %v1854
        %v1856 = vrot.slane %v1831, %v1855
        %v1858 = vadd.f32 %v1851, %v1856
        %v1859 = vpack.c.bf16 %v1858, %v1858
        %v1860 = vld [vmem:[%s10] sm:$0xf]
        %v1861 = vld [vmem:[%s10 + $0x4] sm:$0xf]
        %v1862 = vld [vmem:[%s10 + $0x8] sm:$0xf]
        %v1863 = vld [vmem:[%s10 + $0xc] sm:$0xf]
        %v1864 = vld [vmem:[%s11] sm:$0x1]
        %v1866 = vlaneseq
        %v1867 = vshrl.u32 %v1866, 7
        %v1868 = vsub.s32 0, %v1867
        %v1869 = vrot.slane %v1864, %v1868
        %v1875 = vunpack.c.l.b16 %v1860
        %v1876 = vunpack.c.l.b16 %v1861
        %v1877 = vunpack.c.l.b16 %v1862
        %v1878 = vunpack.c.l.b16 %v1863
        %v1879 = vpack.c.b16 %v1876, %v1875
        %v1880 = vpack.c.b16 %v1878, %v1877
        %v1884 = vsel %vm467, %v1859, 0
        %1886 = vmatprep.subr.bf16.mxu0 0
        %1887 = vmatpush1.bf16.msra.mxu0 %v1879
        %1888 = vmatprep.subr.bf16.mxu0 0
        %1889 = vmatpush1.bf16.msra.mxu0 %v1880
        %1890 = vmatprep.subr.bf16.mxu0 0
        %1891 = vmatpush1.bf16.msra.mxu0 0
        %1892 = vmatprep.subr.bf16.mxu0 0
        %1893 = vmatpush1.bf16.msra.mxu0 0
        %1894 = vmatprep.subr.bf16.mxu0 0
        %1895 = vmatpush1.bf16.msra.mxu0 0
        %1896 = vmatprep.subr.bf16.mxu0 0
        %1897 = vmatpush1.bf16.msra.mxu0 0
        %1898 = vmatprep.subr.bf16.mxu0 0
        %1899 = vmatpush1.bf16.msra.mxu0 0
        %1900 = vmatprep.subr.bf16.mxu0 0
        %1901 = vmatpush1.bf16.msra.mxu0 0
        %1902 = vmatprep.subr.bf16.mxu0 0
        %1903 = vmatpush1.bf16.msra.mxu0 0
        %1904 = vmatprep.subr.bf16.mxu0 0
        %1905 = vmatpush1.bf16.msra.mxu0 0
        %1906 = vmatprep.subr.bf16.mxu0 0
        %1907 = vmatpush1.bf16.msra.mxu0 0
        %1908 = vmatprep.subr.bf16.mxu0 0
        %1909 = vmatpush1.bf16.msra.mxu0 0
        %1910 = vmatprep.subr.bf16.mxu0 0
        %1911 = vmatpush1.bf16.msra.mxu0 0
        %1912 = vmatprep.subr.bf16.mxu0 0
        %1913 = vmatpush1.bf16.msra.mxu0 0
        %1914 = vmatprep.subr.bf16.mxu0 0
        %1915 = vmatpush1.bf16.msra.mxu0 0
        %1916 = vmatprep.subr.bf16.mxu0 0
        %1917 = vmatpush1.bf16.msra.mxu0 0
        %1918 = vmatprep.mubr.bf16.mxu0 0
        %1919 = vmatmul.mubr.bf16.gmra.mrb[0].mxu0 %v1884
        %v1920 = vpop.f32.mrb[0].mxu0
        %v1921 = vadd.f32 %v1869, %v1920
        %v1922 = vpop.f32.mrb[0].mxu0
        %v1923 = vpop.f32.mrb[0].mxu0
        %v1924 = vpop.f32.mrb[0].mxu0
        %1925 = vdwg.mxu0
        %v1926 = vmul.f32 %v1921, 0.5
        %v1927 = vmul.f32 %v1921, %v1921
        %v1928 = vmul.f32 %v1921, %v1927
        %v1929 = vmul.f32 %v1928, 0.044715
        %v1930 = vadd.f32 %v1921, %v1929
        %v1931 = vmul.f32 %v1930, 0.7978845
        %v1932 = vtanh.pop %v1931
        %v1933 = vadd.f32 %v1932, 1.0
        %v1934 = vmul.f32 %v1926, %v1933
        %v1935 = vpack.c.bf16 %v1934, %v1934
        %v1936 = vld [vmem:[%s12] sm:$0xf]
        %v1937 = vld [vmem:[%s12 + $0x4] sm:$0xf]
        %v1938 = vld [vmem:[%s12 + $0x8] sm:$0xf]
        %v1939 = vld [vmem:[%s12 + $0xc] sm:$0xf]
        %v1940 = vld [vmem:[%s12 + $0x10] sm:$0xf]
        %v1941 = vld [vmem:[%s12 + $0x14] sm:$0xf]
        %v1942 = vld [vmem:[%s12 + $0x18] sm:$0xf]
        %v1943 = vld [vmem:[%s12 + $0x1c] sm:$0xf]
        %v1944 = vld [vmem:[%s12 + $0x20] sm:$0xf]
        %v1945 = vld [vmem:[%s12 + $0x24] sm:$0xf]
        %v1946 = vld [vmem:[%s12 + $0x28] sm:$0xf]
        %v1947 = vld [vmem:[%s12 + $0x2c] sm:$0xf]
        %v1948 = vld [vmem:[%s12 + $0x30] sm:$0xf]
        %v1949 = vld [vmem:[%s12 + $0x34] sm:$0xf]
        %v1950 = vld [vmem:[%s12 + $0x38] sm:$0xf]
        %v1951 = vld [vmem:[%s12 + $0x3c] sm:$0xf]
        %v1968 = vunpack.c.l.b16 %v1936
        %v1969 = vunpack.c.l.b16 %v1937
        %v1970 = vunpack.c.l.b16 %v1938
        %v1971 = vunpack.c.l.b16 %v1939
        %v1972 = vunpack.c.l.b16 %v1940
        %v1973 = vunpack.c.l.b16 %v1941
        %v1974 = vunpack.c.l.b16 %v1942
        %v1975 = vunpack.c.l.b16 %v1943
        %v1976 = vunpack.c.l.b16 %v1944
        %v1977 = vunpack.c.l.b16 %v1945
        %v1978 = vunpack.c.l.b16 %v1946
        %v1979 = vunpack.c.l.b16 %v1947
        %v1980 = vunpack.c.l.b16 %v1948
        %v1981 = vunpack.c.l.b16 %v1949
        %v1982 = vunpack.c.l.b16 %v1950
        %v1983 = vunpack.c.l.b16 %v1951
        %v1984 = vpack.c.b16 %v1969, %v1968
        %v1985 = vpack.c.b16 %v1971, %v1970
        %v1986 = vpack.c.b16 %v1973, %v1972
        %v1987 = vpack.c.b16 %v1975, %v1974
        %v1988 = vpack.c.b16 %v1977, %v1976
        %v1989 = vpack.c.b16 %v1979, %v1978
        %v1990 = vpack.c.b16 %v1981, %v1980
        %v1991 = vpack.c.b16 %v1983, %v1982
        %2000 = vmatprep.subr.bf16.mxu0 0
        %2001 = vmatpush1.bf16.msra.mxu0 %v1984
        %2002 = vmatprep.subr.bf16.mxu0 0
        %2003 = vmatpush1.bf16.msra.mxu0 %v1985
        %2004 = vmatprep.subr.bf16.mxu0 0
        %2005 = vmatpush1.bf16.msra.mxu0 %v1986
        %2006 = vmatprep.subr.bf16.mxu0 0
        %2007 = vmatpush1.bf16.msra.mxu0 %v1987
        %2008 = vmatprep.subr.bf16.mxu0 0
        %2009 = vmatpush1.bf16.msra.mxu0 %v1988
        %2010 = vmatprep.subr.bf16.mxu0 0
        %2011 = vmatpush1.bf16.msra.mxu0 %v1989
        %2012 = vmatprep.subr.bf16.mxu0 0
        %2013 = vmatpush1.bf16.msra.mxu0 %v1990
        %2014 = vmatprep.subr.bf16.mxu0 0
        %2015 = vmatpush1.bf16.msra.mxu0 %v1991
        %2016 = vmatprep.subr.bf16.mxu0 0
        %2017 = vmatpush1.bf16.msra.mxu0 0
        %2018 = vmatprep.subr.bf16.mxu0 0
        %2019 = vmatpush1.bf16.msra.mxu0 0
        %2020 = vmatprep.subr.bf16.mxu0 0
        %2021 = vmatpush1.bf16.msra.mxu0 0
        %2022 = vmatprep.subr.bf16.mxu0 0
        %2023 = vmatpush1.bf16.msra.mxu0 0
        %2024 = vmatprep.subr.bf16.mxu0 0
        %2025 = vmatpush1.bf16.msra.mxu0 0
        %2026 = vmatprep.subr.bf16.mxu0 0
        %2027 = vmatpush1.bf16.msra.mxu0 0
        %2028 = vmatprep.subr.bf16.mxu0 0
        %2029 = vmatpush1.bf16.msra.mxu0 0
        %2030 = vmatprep.subr.bf16.mxu0 0
        %2031 = vmatpush1.bf16.msra.mxu0 0
        %2032 = vmatprep.mubr.bf16.mxu0 0
        %2033 = vmatmul.mubr.bf16.gmra.mrb[0].mxu0 %v1935
        %v2034 = vpop.f32.mrb[0].mxu0
        %v2035 = vadd.f32 0.0, %v2034
        %v2036 = vpop.f32.mrb[0].mxu0
        %v2037 = vpop.f32.mrb[0].mxu0
        %v2038 = vpop.f32.mrb[0].mxu0
        %2039 = vdwg.mxu0
        %v2040 = vadd.f32 %v1829, %v2035
        %v2041 = vld [vmem:[%s13] sm:$0x1]
        %v2043 = vlaneseq
        %v2044 = vshrl.u32 %v2043, 7
        %v2045 = vsub.s32 0, %v2044
        %v2046 = vrot.slane %v2041, %v2045
        %v2048 = vadd.f32 %v2040, %v2046
        %2049 = vst.msk [vmem:[%s458] sm:$0xff] %vm467, %v2048
        %s2050 = sand.u32 %s335, 1
        %s2051 = scalar_lea.sflag [#allocation3], %s2050
        %s2052 = sand.u32 %s335, 1
        %s2053 = smul.addr %s2052, 8
        %s2054 = scalar_lea.vmem [#allocation2], %s2053
        // Predicated region
        $region77: #{tpu_custom_call.1} parent=75 // pred_check
          %p2055 = pneg %p345
        $region78: #{tpu_custom_call.1} parent=75 // pred_check_branch
          %2057 = sbr.rel (%p2055) target = $region80
        $region79: #{tpu_custom_call.1} parent=75 // pred_region
          %s2059 = ssub.s32 128, 128
          %2060 = vsyncadd %s2051, %s2059
          %s2061 = smul.addr %s28, 128
          %s2062 = scalar_lea.hbm %s14, %s2061
          %s2064 = sshll.u32 %s2054, 4
          %s2065 = int_to_ptr.vmem [resolvable:$true] %s2064
          %2067 = dma.vmem_to_hbm [thread:$0]  %s2065, 128, %s2062, %s2051
        $region80: #{tpu_custom_call.1} parent=75 // pred_fallthru
          _
      $region76: #{tpu_custom_call.1} parent=5 // pred_fallthru
        _
      %p2068 = scmp.le.s32.totalorder 2, %s23
      // Predicated region
      $region81: #{tpu_custom_call.1} parent=5 // pred_check
        %p2069 = pneg %p2068
      $region82: #{tpu_custom_call.1} parent=5 // pred_check_branch
        %2071 = sbr.rel (%p2069) target = $region84
      $region83: #{tpu_custom_call.1} parent=5 // pred_region
        %s2072 = ssub.s32 %s23, 2
        // Predicated region
        $region85: #{tpu_custom_call.1} parent=83 // pred_check
          %p2073 = pneg %p351
        $region86: #{tpu_custom_call.1} parent=83 // pred_check_branch
          %2075 = sbr.rel (%p2073) target = $region88
        $region87: #{tpu_custom_call.1} parent=83 // pred_region
          %s2076 = sand.u32 %s336, 1
          %s2077 = scalar_lea.sflag [#allocation3], %s2076
          %s2078 = sand.u32 %s336, 1
          %s2079 = smul.addr %s2078, 8
          %s2080 = scalar_lea.vmem [#allocation2], %s2079
          %2081 = dma.done %s2077, 128
        $region88: #{tpu_custom_call.1} parent=83 // pred_fallthru
          _
      $region84: #{tpu_custom_call.1} parent=5 // pred_fallthru
        _
    $region6: #{tpu_custom_call.1} parent=1 // loop_footer
      %s27 = sadd.s32 1, %s23
    $region7: #{tpu_custom_call.1} parent=1 // loop_footer_branch
      %22 = sbr.rel target = $region3
    $region8: #{tpu_custom_call.1} parent=1 // loop_exit
      _
    %2082 = vsyncpa [#allocation3], 1
    %s2083 = scalar_lea.sflag [#allocation3], 1
    %2084 = vsyncpa %s2083, 1

</llo_original>
